<compile_context>
chip_gen: v7x
topology: tpu7x:2x2x1
jax: 0.10.0
libtpu: 0.0.40
codegen_flags: <defaults>
</compile_context>

<pallas_src>
import functools

import jax
import jax.numpy as jnp
from jax.experimental import pallas as pl
from jax.experimental.pallas import tpu as pltpu


def _lstm_encoder_kernel(x_ref, wih_ref, whh_ref, b_ref, wmu_ref, bmu_ref,
                         out_ref, hbuf_ref, *, seq, trj, hidden):
    """Whole-sequence fused LSTM encoder (single grid step).

    x_ref   : (seq*trj, fea)   time-major flattened input (row = t*trj + b)
    wih_ref : (fea, 4H)        W_ih^T, resident in VMEM
    whh_ref : (H, 4H)          W_hh^T, resident in VMEM
    b_ref   : (1, 4H)          b_ih + b_hh
    wmu_ref : (H, O)           last_mu_layer weight^T
    bmu_ref : (1, O)           last_mu_layer bias
    out_ref : (seq*trj, O)     embeddings (time-major flattened)
    hbuf_ref: (seq*trj, H) f32 VMEM scratch holding the h_t history
    """
    H = hidden

    # (1) Batched input projection, hoisted out of the recurrence:
    #     one (seq*trj, fea) @ (fea, 4H) matmul, bias fused.  MXU M = seq*trj.
    gx = (jnp.dot(x_ref[...], wih_ref[...], preferred_element_type=jnp.float32)
          + b_ref[...])                                    # (seq*trj, 4H)

    whh = whh_ref[...]                                     # (H, 4H), loaded once
    h = jnp.zeros((trj, H), jnp.float32)
    c = jnp.zeros((trj, H), jnp.float32)

    # (2) Serial recurrence, fully unrolled (seq is small and static).
    #     Per-step critical path: one (trj, H) @ (H, 4H) matmul + gate math.
    for t in range(seq):
        gates = gx[t * trj:(t + 1) * trj, :] + jnp.dot(
            h, whh, preferred_element_type=jnp.float32)    # (trj, 4H)

        # Full-width activations: 2 EUP passes over the 128-lane gates vreg
        # instead of 4 quarter-width passes; slice the gate groups afterwards.
        sig = jax.nn.sigmoid(gates)
        th = jnp.tanh(gates)
        i_g = sig[:, 0 * H:1 * H]    # input gate
        f_g = sig[:, 1 * H:2 * H]    # forget gate
        g_g = th[:, 2 * H:3 * H]     # cell candidate
        o_g = sig[:, 3 * H:4 * H]    # output gate

        c = f_g * c + i_g * g_g
        h = o_g * jnp.tanh(c)

        # Static, sublane-aligned store of this step's hidden state.
        hbuf_ref[t * trj:(t + 1) * trj, :] = h

    # (3) Batched output projection, hoisted out of the recurrence:
    #     one (seq*trj, H) @ (H, O) matmul + bias, single bulk writeback.
    out = (jnp.dot(hbuf_ref[...], wmu_ref[...], preferred_element_type=jnp.float32)
           + bmu_ref[...])
    out_ref[...] = out.astype(out_ref.dtype)


def recurrent_encoder_forward(x, w_ih, w_hh, b_ih, b_hh, w_mu, b_mu):
    """RecurrentEncoder.forward (do_reset=True, prob_inf=False).

    x    : (trj, seq, input_size)  float32
    w_ih : (4H, input_size), w_hh : (4H, H), b_ih/b_hh : (4H,)   -- torch LSTM layout
    w_mu : (O, H), b_mu : (O,)                                    -- last_mu_layer
    returns embedding (trj, seq, O)
    """
    trj, seq, fea = x.shape
    H = w_hh.shape[1]
    O = w_mu.shape[0]

    # One-time layout plumbing on the XLA side (hoisted out of the kernel path):
    # time-major flattened input so rows for timestep t are contiguous.
    x_flat = jnp.transpose(x, (1, 0, 2)).reshape(seq * trj, fea)
    wih_t = jnp.transpose(w_ih)                  # (fea, 4H)
    whh_t = jnp.transpose(w_hh)                  # (H, 4H)
    b = (b_ih + b_hh).reshape(1, 4 * H)          # fold both LSTM biases
    wmu_t = jnp.transpose(w_mu)                  # (H, O)
    bmu = b_mu.reshape(1, O)

    kernel = functools.partial(_lstm_encoder_kernel, seq=seq, trj=trj, hidden=H)

    out_flat = pl.pallas_call(
        kernel,
        out_shape=jax.ShapeDtypeStruct((seq * trj, O), x.dtype),
        grid_spec=pltpu.PrefetchScalarGridSpec(
            num_scalar_prefetch=0,
            grid=(1,),                            # single invocation; time loop in-kernel
            in_specs=[
                pl.BlockSpec((seq * trj, fea), lambda i: (0, 0)),   # whole input resident
                pl.BlockSpec((fea, 4 * H), lambda i: (0, 0)),
                pl.BlockSpec((H, 4 * H), lambda i: (0, 0)),
                pl.BlockSpec((1, 4 * H), lambda i: (0, 0)),
                pl.BlockSpec((H, O), lambda i: (0, 0)),
                pl.BlockSpec((1, O), lambda i: (0, 0)),
            ],
            out_specs=pl.BlockSpec((seq * trj, O), lambda i: (0, 0)),
            scratch_shapes=[
                pltpu.VMEM((seq * trj, H), jnp.float32),   # h history for mu matmul
            ],
        ),
        compiler_params=pltpu.CompilerParams(
            dimension_semantics=("arbitrary",),
        ),
    )(x_flat, wih_t, whh_t, b, wmu_t, bmu)

    # Back to (trj, seq, O).
    return out_flat.reshape(seq, trj, O).transpose(1, 0, 2)


def recurrent_encoder_ref(x, w_ih, w_hh, b_ih, b_hh, w_mu, b_mu):
    """Pure-JAX reference matching torch nn.LSTM(+Linear) in eval mode."""
    trj, seq, _ = x.shape
    H = w_hh.shape[1]
    h = jnp.zeros((trj, H), jnp.float32)
    c = jnp.zeros((trj, H), jnp.float32)
    hs = []
    for t in range(seq):
        gates = x[:, t, :] @ w_ih.T + b_ih + h @ w_hh.T + b_hh
        i = jax.nn.sigmoid(gates[:, 0 * H:1 * H])
        f = jax.nn.sigmoid(gates[:, 1 * H:2 * H])
        g = jnp.tanh(gates[:, 2 * H:3 * H])
        o = jax.nn.sigmoid(gates[:, 3 * H:4 * H])
        c = f * c + i * g
        h = o * jnp.tanh(c)
        hs.append(h)
    hs = jnp.stack(hs, axis=1)                  # (trj, seq, H)
    return hs @ w_mu.T + b_mu


if __name__ == "__main__":
    # Small shapes consistent with the module: trj trajectories, seq timesteps,
    # input_size features per step, hidden_size LSTM units, output_size embed dim.
    trj, seq = 8, 10
    input_size, hidden_size, output_size = 24, 32, 32

    key = jax.random.PRNGKey(0)
    kx, k1, k2, k3, k4, k5, k6 = jax.random.split(key, 7)

    x = jax.random.normal(kx, (trj, seq, input_size), dtype=jnp.float32)

    # Deterministic parameter init (torch nn.LSTM default: U(-1/sqrt(H), 1/sqrt(H))).
    bound = 1.0 / (hidden_size ** 0.5)
    w_ih = jax.random.uniform(k1, (4 * hidden_size, input_size), jnp.float32, -bound, bound)
    w_hh = jax.random.uniform(k2, (4 * hidden_size, hidden_size), jnp.float32, -bound, bound)
    b_ih = jax.random.uniform(k3, (4 * hidden_size,), jnp.float32, -bound, bound)
    b_hh = jax.random.uniform(k4, (4 * hidden_size,), jnp.float32, -bound, bound)

    # last_mu_layer init per rnn_initialization=True: U(-0.003, 0.003).
    w_mu = jax.random.uniform(k5, (output_size, hidden_size), jnp.float32, -0.003, 0.003)
    b_mu = jax.random.uniform(k6, (output_size,), jnp.float32, -0.003, 0.003)

    emb = recurrent_encoder_forward(x, w_ih, w_hh, b_ih, b_hh, w_mu, b_mu)
    emb = jax.block_until_ready(emb)

    ref = recurrent_encoder_ref(x, w_ih, w_hh, b_ih, b_hh, w_mu, b_mu)
    assert emb.shape == (trj, seq, output_size)
    assert jnp.allclose(emb, ref, atol=1e-4, rtol=1e-4), "mismatch vs reference"

    print("KERNEL_OK")
</pallas_src>

<mosaic_0001>
module attributes {stable_mosaic.version = 11 : i64} {
  func.func @_lstm_encoder_kernel(%arg0: i32, %arg1: memref<80x24xf32, #tpu.memory_space<vmem>>, %arg2: memref<24x128xf32, #tpu.memory_space<vmem>>, %arg3: memref<32x128xf32, #tpu.memory_space<vmem>>, %arg4: memref<1x128xf32, #tpu.memory_space<vmem>>, %arg5: memref<32x32xf32, #tpu.memory_space<vmem>>, %arg6: memref<1x32xf32, #tpu.memory_space<vmem>>, %arg7: memref<80x32xf32, #tpu.memory_space<vmem>>, %arg8: memref<80x32xf32, #tpu.memory_space<vmem>>) attributes {dimension_semantics = [#tpu.dimension_semantics<arbitrary>], iteration_bounds = array<i64: 1>, scalar_prefetch = 0 : i64, scratch_operands = 1 : i64, tpu.core_type = #tpu.core_type<tc>, window_params = [{pipeline_mode = #tpu.pipeline_mode<synchronous>, transform_indices = @transform_0, window_bounds = array<i64: 80, 24>}, {pipeline_mode = #tpu.pipeline_mode<synchronous>, transform_indices = @transform_1, window_bounds = array<i64: 24, 128>}, {pipeline_mode = #tpu.pipeline_mode<synchronous>, transform_indices = @transform_2, window_bounds = array<i64: 32, 128>}, {pipeline_mode = #tpu.pipeline_mode<synchronous>, transform_indices = @transform_3, window_bounds = array<i64: 1, 128>}, {pipeline_mode = #tpu.pipeline_mode<synchronous>, transform_indices = @transform_4, window_bounds = array<i64: 32, 32>}, {pipeline_mode = #tpu.pipeline_mode<synchronous>, transform_indices = @transform_5, window_bounds = array<i64: 1, 32>}, {pipeline_mode = #tpu.pipeline_mode<synchronous>, transform_indices = @transform_6, window_bounds = array<i64: 80, 32>}]} {
    %c0 = arith.constant 0 : index
    %c0_0 = arith.constant 0 : index
    %0 = vector.load %arg1[%c0, %c0_0] : memref<80x24xf32, #tpu.memory_space<vmem>>, vector<80x24xf32>
    %c0_1 = arith.constant 0 : index
    %c0_2 = arith.constant 0 : index
    %1 = vector.load %arg2[%c0_1, %c0_2] : memref<24x128xf32, #tpu.memory_space<vmem>>, vector<24x128xf32>
    %cst = arith.constant dense<0.000000e+00> : vector<80x128xf32>
    %2 = tpu.matmul %0, %1, %cst {dimension_numbers = #tpu.dot_dimension_numbers<[1], [0], [0], [1], [0, 0, 1, 1], [], []>} : vector<80x24xf32>, vector<24x128xf32>, vector<80x128xf32> -> vector<80x128xf32>
    %c0_3 = arith.constant 0 : index
    %c0_4 = arith.constant 0 : index
    %3 = vector.load %arg4[%c0_3, %c0_4] : memref<1x128xf32, #tpu.memory_space<vmem>>, vector<1x128xf32>
    %4 = vector.broadcast %3 : vector<1x128xf32> to vector<80x128xf32>
    %5 = arith.addf %2, %4 : vector<80x128xf32>
    %c0_5 = arith.constant 0 : index
    %c0_6 = arith.constant 0 : index
    %6 = vector.load %arg3[%c0_5, %c0_6] : memref<32x128xf32, #tpu.memory_space<vmem>>, vector<32x128xf32>
    %cst_7 = arith.constant 0.000000e+00 : f32
    %7 = vector.broadcast %cst_7 : f32 to vector<8x32xf32>
    %cst_8 = arith.constant 0.000000e+00 : f32
    %8 = vector.broadcast %cst_8 : f32 to vector<8x32xf32>
    %9 = vector.extract_strided_slice %5 {offsets = [0, 0], sizes = [8, 128], strides = [1, 1]} : vector<80x128xf32> to vector<8x128xf32>
    %cst_9 = arith.constant dense<0.000000e+00> : vector<8x128xf32>
    %10 = tpu.matmul %7, %6, %cst_9 {dimension_numbers = #tpu.dot_dimension_numbers<[1], [0], [0], [1], [0, 0, 1, 1], [], []>} : vector<8x32xf32>, vector<32x128xf32>, vector<8x128xf32> -> vector<8x128xf32>
    %11 = arith.addf %9, %10 : vector<8x128xf32>
    %12 = arith.negf %11 : vector<8x128xf32>
    %13 = math.exp %12 : vector<8x128xf32>
    %cst_10 = arith.constant 1.000000e+00 : f32
    %14 = vector.broadcast %cst_10 : f32 to vector<8x128xf32>
    %15 = arith.addf %14, %13 : vector<8x128xf32>
    %16 = arith.divf %14, %15 : vector<8x128xf32>
    %17 = math.tanh %11 : vector<8x128xf32>
    %18 = vector.extract_strided_slice %16 {offsets = [0, 0], sizes = [8, 32], strides = [1, 1]} : vector<8x128xf32> to vector<8x32xf32>
    %19 = vector.extract_strided_slice %16 {offsets = [0, 32], sizes = [8, 32], strides = [1, 1]} : vector<8x128xf32> to vector<8x32xf32>
    %20 = vector.extract_strided_slice %17 {offsets = [0, 64], sizes = [8, 32], strides = [1, 1]} : vector<8x128xf32> to vector<8x32xf32>
    %21 = vector.extract_strided_slice %16 {offsets = [0, 96], sizes = [8, 32], strides = [1, 1]} : vector<8x128xf32> to vector<8x32xf32>
    %22 = arith.mulf %19, %8 : vector<8x32xf32>
    %23 = arith.mulf %18, %20 : vector<8x32xf32>
    %24 = arith.addf %22, %23 : vector<8x32xf32>
    %25 = math.tanh %24 : vector<8x32xf32>
    %26 = arith.mulf %21, %25 : vector<8x32xf32>
    %c0_11 = arith.constant 0 : index
    %c0_12 = arith.constant 0 : index
    %27 = vector.load %arg8[%c0_11, %c0_12] : memref<80x32xf32, #tpu.memory_space<vmem>>, vector<8x32xf32>
    tpu.vector_store %arg8[%c0_11, %c0_12], %26 {strides = array<i32>} : memref<80x32xf32, #tpu.memory_space<vmem>>, vector<8x32xf32>,
    %28 = vector.extract_strided_slice %5 {offsets = [8, 0], sizes = [8, 128], strides = [1, 1]} : vector<80x128xf32> to vector<8x128xf32>
    %cst_13 = arith.constant dense<0.000000e+00> : vector<8x128xf32>
    %29 = tpu.matmul %26, %6, %cst_13 {dimension_numbers = #tpu.dot_dimension_numbers<[1], [0], [0], [1], [0, 0, 1, 1], [], []>} : vector<8x32xf32>, vector<32x128xf32>, vector<8x128xf32> -> vector<8x128xf32>
    %30 = arith.addf %28, %29 : vector<8x128xf32>
    %31 = arith.negf %30 : vector<8x128xf32>
    %32 = math.exp %31 : vector<8x128xf32>
    %cst_14 = arith.constant 1.000000e+00 : f32
    %33 = vector.broadcast %cst_14 : f32 to vector<8x128xf32>
    %34 = arith.addf %33, %32 : vector<8x128xf32>
    %35 = arith.divf %33, %34 : vector<8x128xf32>
    %36 = math.tanh %30 : vector<8x128xf32>
    %37 = vector.extract_strided_slice %35 {offsets = [0, 0], sizes = [8, 32], strides = [1, 1]} : vector<8x128xf32> to vector<8x32xf32>
    %38 = vector.extract_strided_slice %35 {offsets = [0, 32], sizes = [8, 32], strides = [1, 1]} : vector<8x128xf32> to vector<8x32xf32>
    %39 = vector.extract_strided_slice %36 {offsets = [0, 64], sizes = [8, 32], strides = [1, 1]} : vector<8x128xf32> to vector<8x32xf32>
    %40 = vector.extract_strided_slice %35 {offsets = [0, 96], sizes = [8, 32], strides = [1, 1]} : vector<8x128xf32> to vector<8x32xf32>
    %41 = arith.mulf %38, %24 : vector<8x32xf32>
    %42 = arith.mulf %37, %39 : vector<8x32xf32>
    %43 = arith.addf %41, %42 : vector<8x32xf32>
    %44 = math.tanh %43 : vector<8x32xf32>
    %45 = arith.mulf %40, %44 : vector<8x32xf32>
    %c8 = arith.constant 8 : index
    %c0_15 = arith.constant 0 : index
    %46 = vector.load %arg8[%c8, %c0_15] : memref<80x32xf32, #tpu.memory_space<vmem>>, vector<8x32xf32>
    tpu.vector_store %arg8[%c8, %c0_15], %45 {strides = array<i32>} : memref<80x32xf32, #tpu.memory_space<vmem>>, vector<8x32xf32>,
    %47 = vector.extract_strided_slice %5 {offsets = [16, 0], sizes = [8, 128], strides = [1, 1]} : vector<80x128xf32> to vector<8x128xf32>
    %cst_16 = arith.constant dense<0.000000e+00> : vector<8x128xf32>
    %48 = tpu.matmul %45, %6, %cst_16 {dimension_numbers = #tpu.dot_dimension_numbers<[1], [0], [0], [1], [0, 0, 1, 1], [], []>} : vector<8x32xf32>, vector<32x128xf32>, vector<8x128xf32> -> vector<8x128xf32>
    %49 = arith.addf %47, %48 : vector<8x128xf32>
    %50 = arith.negf %49 : vector<8x128xf32>
    %51 = math.exp %50 : vector<8x128xf32>
    %cst_17 = arith.constant 1.000000e+00 : f32
    %52 = vector.broadcast %cst_17 : f32 to vector<8x128xf32>
    %53 = arith.addf %52, %51 : vector<8x128xf32>
    %54 = arith.divf %52, %53 : vector<8x128xf32>
    %55 = math.tanh %49 : vector<8x128xf32>
    %56 = vector.extract_strided_slice %54 {offsets = [0, 0], sizes = [8, 32], strides = [1, 1]} : vector<8x128xf32> to vector<8x32xf32>
    %57 = vector.extract_strided_slice %54 {offsets = [0, 32], sizes = [8, 32], strides = [1, 1]} : vector<8x128xf32> to vector<8x32xf32>
    %58 = vector.extract_strided_slice %55 {offsets = [0, 64], sizes = [8, 32], strides = [1, 1]} : vector<8x128xf32> to vector<8x32xf32>
    %59 = vector.extract_strided_slice %54 {offsets = [0, 96], sizes = [8, 32], strides = [1, 1]} : vector<8x128xf32> to vector<8x32xf32>
    %60 = arith.mulf %57, %43 : vector<8x32xf32>
    %61 = arith.mulf %56, %58 : vector<8x32xf32>
    %62 = arith.addf %60, %61 : vector<8x32xf32>
    %63 = math.tanh %62 : vector<8x32xf32>
    %64 = arith.mulf %59, %63 : vector<8x32xf32>
    %c16 = arith.constant 16 : index
    %c0_18 = arith.constant 0 : index
    %65 = vector.load %arg8[%c16, %c0_18] : memref<80x32xf32, #tpu.memory_space<vmem>>, vector<8x32xf32>
    tpu.vector_store %arg8[%c16, %c0_18], %64 {strides = array<i32>} : memref<80x32xf32, #tpu.memory_space<vmem>>, vector<8x32xf32>,
    %66 = vector.extract_strided_slice %5 {offsets = [24, 0], sizes = [8, 128], strides = [1, 1]} : vector<80x128xf32> to vector<8x128xf32>
    %cst_19 = arith.constant dense<0.000000e+00> : vector<8x128xf32>
    %67 = tpu.matmul %64, %6, %cst_19 {dimension_numbers = #tpu.dot_dimension_numbers<[1], [0], [0], [1], [0, 0, 1, 1], [], []>} : vector<8x32xf32>, vector<32x128xf32>, vector<8x128xf32> -> vector<8x128xf32>
    %68 = arith.addf %66, %67 : vector<8x128xf32>
    %69 = arith.negf %68 : vector<8x128xf32>
    %70 = math.exp %69 : vector<8x128xf32>
    %cst_20 = arith.constant 1.000000e+00 : f32
    %71 = vector.broadcast %cst_20 : f32 to vector<8x128xf32>
    %72 = arith.addf %71, %70 : vector<8x128xf32>
    %73 = arith.divf %71, %72 : vector<8x128xf32>
    %74 = math.tanh %68 : vector<8x128xf32>
    %75 = vector.extract_strided_slice %73 {offsets = [0, 0], sizes = [8, 32], strides = [1, 1]} : vector<8x128xf32> to vector<8x32xf32>
    %76 = vector.extract_strided_slice %73 {offsets = [0, 32], sizes = [8, 32], strides = [1, 1]} : vector<8x128xf32> to vector<8x32xf32>
    %77 = vector.extract_strided_slice %74 {offsets = [0, 64], sizes = [8, 32], strides = [1, 1]} : vector<8x128xf32> to vector<8x32xf32>
    %78 = vector.extract_strided_slice %73 {offsets = [0, 96], sizes = [8, 32], strides = [1, 1]} : vector<8x128xf32> to vector<8x32xf32>
    %79 = arith.mulf %76, %62 : vector<8x32xf32>
    %80 = arith.mulf %75, %77 : vector<8x32xf32>
    %81 = arith.addf %79, %80 : vector<8x32xf32>
    %82 = math.tanh %81 : vector<8x32xf32>
    %83 = arith.mulf %78, %82 : vector<8x32xf32>
    %c24 = arith.constant 24 : index
    %c0_21 = arith.constant 0 : index
    %84 = vector.load %arg8[%c24, %c0_21] : memref<80x32xf32, #tpu.memory_space<vmem>>, vector<8x32xf32>
    tpu.vector_store %arg8[%c24, %c0_21], %83 {strides = array<i32>} : memref<80x32xf32, #tpu.memory_space<vmem>>, vector<8x32xf32>,
    %85 = vector.extract_strided_slice %5 {offsets = [32, 0], sizes = [8, 128], strides = [1, 1]} : vector<80x128xf32> to vector<8x128xf32>
    %cst_22 = arith.constant dense<0.000000e+00> : vector<8x128xf32>
    %86 = tpu.matmul %83, %6, %cst_22 {dimension_numbers = #tpu.dot_dimension_numbers<[1], [0], [0], [1], [0, 0, 1, 1], [], []>} : vector<8x32xf32>, vector<32x128xf32>, vector<8x128xf32> -> vector<8x128xf32>
    %87 = arith.addf %85, %86 : vector<8x128xf32>
    %88 = arith.negf %87 : vector<8x128xf32>
    %89 = math.exp %88 : vector<8x128xf32>
    %cst_23 = arith.constant 1.000000e+00 : f32
    %90 = vector.broadcast %cst_23 : f32 to vector<8x128xf32>
    %91 = arith.addf %90, %89 : vector<8x128xf32>
    %92 = arith.divf %90, %91 : vector<8x128xf32>
    %93 = math.tanh %87 : vector<8x128xf32>
    %94 = vector.extract_strided_slice %92 {offsets = [0, 0], sizes = [8, 32], strides = [1, 1]} : vector<8x128xf32> to vector<8x32xf32>
    %95 = vector.extract_strided_slice %92 {offsets = [0, 32], sizes = [8, 32], strides = [1, 1]} : vector<8x128xf32> to vector<8x32xf32>
    %96 = vector.extract_strided_slice %93 {offsets = [0, 64], sizes = [8, 32], strides = [1, 1]} : vector<8x128xf32> to vector<8x32xf32>
    %97 = vector.extract_strided_slice %92 {offsets = [0, 96], sizes = [8, 32], strides = [1, 1]} : vector<8x128xf32> to vector<8x32xf32>
    %98 = arith.mulf %95, %81 : vector<8x32xf32>
    %99 = arith.mulf %94, %96 : vector<8x32xf32>
    %100 = arith.addf %98, %99 : vector<8x32xf32>
    %101 = math.tanh %100 : vector<8x32xf32>
    %102 = arith.mulf %97, %101 : vector<8x32xf32>
    %c32 = arith.constant 32 : index
    %c0_24 = arith.constant 0 : index
    %103 = vector.load %arg8[%c32, %c0_24] : memref<80x32xf32, #tpu.memory_space<vmem>>, vector<8x32xf32>
    tpu.vector_store %arg8[%c32, %c0_24], %102 {strides = array<i32>} : memref<80x32xf32, #tpu.memory_space<vmem>>, vector<8x32xf32>,
    %104 = vector.extract_strided_slice %5 {offsets = [40, 0], sizes = [8, 128], strides = [1, 1]} : vector<80x128xf32> to vector<8x128xf32>
    %cst_25 = arith.constant dense<0.000000e+00> : vector<8x128xf32>
    %105 = tpu.matmul %102, %6, %cst_25 {dimension_numbers = #tpu.dot_dimension_numbers<[1], [0], [0], [1], [0, 0, 1, 1], [], []>} : vector<8x32xf32>, vector<32x128xf32>, vector<8x128xf32> -> vector<8x128xf32>
    %106 = arith.addf %104, %105 : vector<8x128xf32>
    %107 = arith.negf %106 : vector<8x128xf32>
    %108 = math.exp %107 : vector<8x128xf32>
    %cst_26 = arith.constant 1.000000e+00 : f32
    %109 = vector.broadcast %cst_26 : f32 to vector<8x128xf32>
    %110 = arith.addf %109, %108 : vector<8x128xf32>
    %111 = arith.divf %109, %110 : vector<8x128xf32>
    %112 = math.tanh %106 : vector<8x128xf32>
    %113 = vector.extract_strided_slice %111 {offsets = [0, 0], sizes = [8, 32], strides = [1, 1]} : vector<8x128xf32> to vector<8x32xf32>
    %114 = vector.extract_strided_slice %111 {offsets = [0, 32], sizes = [8, 32], strides = [1, 1]} : vector<8x128xf32> to vector<8x32xf32>
    %115 = vector.extract_strided_slice %112 {offsets = [0, 64], sizes = [8, 32], strides = [1, 1]} : vector<8x128xf32> to vector<8x32xf32>
    %116 = vector.extract_strided_slice %111 {offsets = [0, 96], sizes = [8, 32], strides = [1, 1]} : vector<8x128xf32> to vector<8x32xf32>
    %117 = arith.mulf %114, %100 : vector<8x32xf32>
    %118 = arith.mulf %113, %115 : vector<8x32xf32>
    %119 = arith.addf %117, %118 : vector<8x32xf32>
    %120 = math.tanh %119 : vector<8x32xf32>
    %121 = arith.mulf %116, %120 : vector<8x32xf32>
    %c40 = arith.constant 40 : index
    %c0_27 = arith.constant 0 : index
    %122 = vector.load %arg8[%c40, %c0_27] : memref<80x32xf32, #tpu.memory_space<vmem>>, vector<8x32xf32>
    tpu.vector_store %arg8[%c40, %c0_27], %121 {strides = array<i32>} : memref<80x32xf32, #tpu.memory_space<vmem>>, vector<8x32xf32>,
    %123 = vector.extract_strided_slice %5 {offsets = [48, 0], sizes = [8, 128], strides = [1, 1]} : vector<80x128xf32> to vector<8x128xf32>
    %cst_28 = arith.constant dense<0.000000e+00> : vector<8x128xf32>
    %124 = tpu.matmul %121, %6, %cst_28 {dimension_numbers = #tpu.dot_dimension_numbers<[1], [0], [0], [1], [0, 0, 1, 1], [], []>} : vector<8x32xf32>, vector<32x128xf32>, vector<8x128xf32> -> vector<8x128xf32>
    %125 = arith.addf %123, %124 : vector<8x128xf32>
    %126 = arith.negf %125 : vector<8x128xf32>
    %127 = math.exp %126 : vector<8x128xf32>
    %cst_29 = arith.constant 1.000000e+00 : f32
    %128 = vector.broadcast %cst_29 : f32 to vector<8x128xf32>
    %129 = arith.addf %128, %127 : vector<8x128xf32>
    %130 = arith.divf %128, %129 : vector<8x128xf32>
    %131 = math.tanh %125 : vector<8x128xf32>
    %132 = vector.extract_strided_slice %130 {offsets = [0, 0], sizes = [8, 32], strides = [1, 1]} : vector<8x128xf32> to vector<8x32xf32>
    %133 = vector.extract_strided_slice %130 {offsets = [0, 32], sizes = [8, 32], strides = [1, 1]} : vector<8x128xf32> to vector<8x32xf32>
    %134 = vector.extract_strided_slice %131 {offsets = [0, 64], sizes = [8, 32], strides = [1, 1]} : vector<8x128xf32> to vector<8x32xf32>
    %135 = vector.extract_strided_slice %130 {offsets = [0, 96], sizes = [8, 32], strides = [1, 1]} : vector<8x128xf32> to vector<8x32xf32>
    %136 = arith.mulf %133, %119 : vector<8x32xf32>
    %137 = arith.mulf %132, %134 : vector<8x32xf32>
    %138 = arith.addf %136, %137 : vector<8x32xf32>
    %139 = math.tanh %138 : vector<8x32xf32>
    %140 = arith.mulf %135, %139 : vector<8x32xf32>
    %c48 = arith.constant 48 : index
    %c0_30 = arith.constant 0 : index
    %141 = vector.load %arg8[%c48, %c0_30] : memref<80x32xf32, #tpu.memory_space<vmem>>, vector<8x32xf32>
    tpu.vector_store %arg8[%c48, %c0_30], %140 {strides = array<i32>} : memref<80x32xf32, #tpu.memory_space<vmem>>, vector<8x32xf32>,
    %142 = vector.extract_strided_slice %5 {offsets = [56, 0], sizes = [8, 128], strides = [1, 1]} : vector<80x128xf32> to vector<8x128xf32>
    %cst_31 = arith.constant dense<0.000000e+00> : vector<8x128xf32>
    %143 = tpu.matmul %140, %6, %cst_31 {dimension_numbers = #tpu.dot_dimension_numbers<[1], [0], [0], [1], [0, 0, 1, 1], [], []>} : vector<8x32xf32>, vector<32x128xf32>, vector<8x128xf32> -> vector<8x128xf32>
    %144 = arith.addf %142, %143 : vector<8x128xf32>
    %145 = arith.negf %144 : vector<8x128xf32>
    %146 = math.exp %145 : vector<8x128xf32>
    %cst_32 = arith.constant 1.000000e+00 : f32
    %147 = vector.broadcast %cst_32 : f32 to vector<8x128xf32>
    %148 = arith.addf %147, %146 : vector<8x128xf32>
    %149 = arith.divf %147, %148 : vector<8x128xf32>
    %150 = math.tanh %144 : vector<8x128xf32>
    %151 = vector.extract_strided_slice %149 {offsets = [0, 0], sizes = [8, 32], strides = [1, 1]} : vector<8x128xf32> to vector<8x32xf32>
    %152 = vector.extract_strided_slice %149 {offsets = [0, 32], sizes = [8, 32], strides = [1, 1]} : vector<8x128xf32> to vector<8x32xf32>
    %153 = vector.extract_strided_slice %150 {offsets = [0, 64], sizes = [8, 32], strides = [1, 1]} : vector<8x128xf32> to vector<8x32xf32>
    %154 = vector.extract_strided_slice %149 {offsets = [0, 96], sizes = [8, 32], strides = [1, 1]} : vector<8x128xf32> to vector<8x32xf32>
    %155 = arith.mulf %152, %138 : vector<8x32xf32>
    %156 = arith.mulf %151, %153 : vector<8x32xf32>
    %157 = arith.addf %155, %156 : vector<8x32xf32>
    %158 = math.tanh %157 : vector<8x32xf32>
    %159 = arith.mulf %154, %158 : vector<8x32xf32>
    %c56 = arith.constant 56 : index
    %c0_33 = arith.constant 0 : index
    %160 = vector.load %arg8[%c56, %c0_33] : memref<80x32xf32, #tpu.memory_space<vmem>>, vector<8x32xf32>
    tpu.vector_store %arg8[%c56, %c0_33], %159 {strides = array<i32>} : memref<80x32xf32, #tpu.memory_space<vmem>>, vector<8x32xf32>,
    %161 = vector.extract_strided_slice %5 {offsets = [64, 0], sizes = [8, 128], strides = [1, 1]} : vector<80x128xf32> to vector<8x128xf32>
    %cst_34 = arith.constant dense<0.000000e+00> : vector<8x128xf32>
    %162 = tpu.matmul %159, %6, %cst_34 {dimension_numbers = #tpu.dot_dimension_numbers<[1], [0], [0], [1], [0, 0, 1, 1], [], []>} : vector<8x32xf32>, vector<32x128xf32>, vector<8x128xf32> -> vector<8x128xf32>
    %163 = arith.addf %161, %162 : vector<8x128xf32>
    %164 = arith.negf %163 : vector<8x128xf32>
    %165 = math.exp %164 : vector<8x128xf32>
    %cst_35 = arith.constant 1.000000e+00 : f32
    %166 = vector.broadcast %cst_35 : f32 to vector<8x128xf32>
    %167 = arith.addf %166, %165 : vector<8x128xf32>
    %168 = arith.divf %166, %167 : vector<8x128xf32>
    %169 = math.tanh %163 : vector<8x128xf32>
    %170 = vector.extract_strided_slice %168 {offsets = [0, 0], sizes = [8, 32], strides = [1, 1]} : vector<8x128xf32> to vector<8x32xf32>
    %171 = vector.extract_strided_slice %168 {offsets = [0, 32], sizes = [8, 32], strides = [1, 1]} : vector<8x128xf32> to vector<8x32xf32>
    %172 = vector.extract_strided_slice %169 {offsets = [0, 64], sizes = [8, 32], strides = [1, 1]} : vector<8x128xf32> to vector<8x32xf32>
    %173 = vector.extract_strided_slice %168 {offsets = [0, 96], sizes = [8, 32], strides = [1, 1]} : vector<8x128xf32> to vector<8x32xf32>
    %174 = arith.mulf %171, %157 : vector<8x32xf32>
    %175 = arith.mulf %170, %172 : vector<8x32xf32>
    %176 = arith.addf %174, %175 : vector<8x32xf32>
    %177 = math.tanh %176 : vector<8x32xf32>
    %178 = arith.mulf %173, %177 : vector<8x32xf32>
    %c64 = arith.constant 64 : index
    %c0_36 = arith.constant 0 : index
    %179 = vector.load %arg8[%c64, %c0_36] : memref<80x32xf32, #tpu.memory_space<vmem>>, vector<8x32xf32>
    tpu.vector_store %arg8[%c64, %c0_36], %178 {strides = array<i32>} : memref<80x32xf32, #tpu.memory_space<vmem>>, vector<8x32xf32>,
    %180 = vector.extract_strided_slice %5 {offsets = [72, 0], sizes = [8, 128], strides = [1, 1]} : vector<80x128xf32> to vector<8x128xf32>
    %cst_37 = arith.constant dense<0.000000e+00> : vector<8x128xf32>
    %181 = tpu.matmul %178, %6, %cst_37 {dimension_numbers = #tpu.dot_dimension_numbers<[1], [0], [0], [1], [0, 0, 1, 1], [], []>} : vector<8x32xf32>, vector<32x128xf32>, vector<8x128xf32> -> vector<8x128xf32>
    %182 = arith.addf %180, %181 : vector<8x128xf32>
    %183 = arith.negf %182 : vector<8x128xf32>
    %184 = math.exp %183 : vector<8x128xf32>
    %cst_38 = arith.constant 1.000000e+00 : f32
    %185 = vector.broadcast %cst_38 : f32 to vector<8x128xf32>
    %186 = arith.addf %185, %184 : vector<8x128xf32>
    %187 = arith.divf %185, %186 : vector<8x128xf32>
    %188 = math.tanh %182 : vector<8x128xf32>
    %189 = vector.extract_strided_slice %187 {offsets = [0, 0], sizes = [8, 32], strides = [1, 1]} : vector<8x128xf32> to vector<8x32xf32>
    %190 = vector.extract_strided_slice %187 {offsets = [0, 32], sizes = [8, 32], strides = [1, 1]} : vector<8x128xf32> to vector<8x32xf32>
    %191 = vector.extract_strided_slice %188 {offsets = [0, 64], sizes = [8, 32], strides = [1, 1]} : vector<8x128xf32> to vector<8x32xf32>
    %192 = vector.extract_strided_slice %187 {offsets = [0, 96], sizes = [8, 32], strides = [1, 1]} : vector<8x128xf32> to vector<8x32xf32>
    %193 = arith.mulf %190, %176 : vector<8x32xf32>
    %194 = arith.mulf %189, %191 : vector<8x32xf32>
    %195 = arith.addf %193, %194 : vector<8x32xf32>
    %196 = math.tanh %195 : vector<8x32xf32>
    %197 = arith.mulf %192, %196 : vector<8x32xf32>
    %c72 = arith.constant 72 : index
    %c0_39 = arith.constant 0 : index
    %198 = vector.load %arg8[%c72, %c0_39] : memref<80x32xf32, #tpu.memory_space<vmem>>, vector<8x32xf32>
    tpu.vector_store %arg8[%c72, %c0_39], %197 {strides = array<i32>} : memref<80x32xf32, #tpu.memory_space<vmem>>, vector<8x32xf32>,
    %c0_40 = arith.constant 0 : index
    %c0_41 = arith.constant 0 : index
    %199 = vector.load %arg8[%c0_40, %c0_41] : memref<80x32xf32, #tpu.memory_space<vmem>>, vector<80x32xf32>
    %c0_42 = arith.constant 0 : index
    %c0_43 = arith.constant 0 : index
    %200 = vector.load %arg5[%c0_42, %c0_43] : memref<32x32xf32, #tpu.memory_space<vmem>>, vector<32x32xf32>
    %cst_44 = arith.constant dense<0.000000e+00> : vector<80x32xf32>
    %201 = tpu.matmul %199, %200, %cst_44 {dimension_numbers = #tpu.dot_dimension_numbers<[1], [0], [0], [1], [0, 0, 1, 1], [], []>} : vector<80x32xf32>, vector<32x32xf32>, vector<80x32xf32> -> vector<80x32xf32>
    %c0_45 = arith.constant 0 : index
    %c0_46 = arith.constant 0 : index
    %202 = vector.load %arg6[%c0_45, %c0_46] : memref<1x32xf32, #tpu.memory_space<vmem>>, vector<1x32xf32>
    %203 = vector.broadcast %202 : vector<1x32xf32> to vector<80x32xf32>
    %204 = arith.addf %201, %203 : vector<80x32xf32>
    %c0_47 = arith.constant 0 : index
    %c0_48 = arith.constant 0 : index
    %205 = vector.load %arg7[%c0_47, %c0_48] : memref<80x32xf32, #tpu.memory_space<vmem>>, vector<80x32xf32>
    tpu.vector_store %arg7[%c0_47, %c0_48], %204 {strides = array<i32>} : memref<80x32xf32, #tpu.memory_space<vmem>>, vector<80x32xf32>,
    return
  }
  func.func @transform_0(%arg0: i32) -> (i32, i32) {
    %c0_i32 = arith.constant 0 : i32
    %c0_i32_0 = arith.constant 0 : i32
    %c0_i32_1 = arith.constant 0 : i32
    return %c0_i32, %c0_i32_0 : i32, i32
  }
  func.func @transform_1(%arg0: i32) -> (i32, i32) {
    %c0_i32 = arith.constant 0 : i32
    %c0_i32_0 = arith.constant 0 : i32
    %c0_i32_1 = arith.constant 0 : i32
    return %c0_i32, %c0_i32_0 : i32, i32
  }
  func.func @transform_2(%arg0: i32) -> (i32, i32) {
    %c0_i32 = arith.constant 0 : i32
    %c0_i32_0 = arith.constant 0 : i32
    %c0_i32_1 = arith.constant 0 : i32
    return %c0_i32, %c0_i32_0 : i32, i32
  }
  func.func @transform_3(%arg0: i32) -> (i32, i32) {
    %c0_i32 = arith.constant 0 : i32
    %c0_i32_0 = arith.constant 0 : i32
    %c0_i32_1 = arith.constant 0 : i32
    return %c0_i32, %c0_i32_0 : i32, i32
  }
  func.func @transform_4(%arg0: i32) -> (i32, i32) {
    %c0_i32 = arith.constant 0 : i32
    %c0_i32_0 = arith.constant 0 : i32
    %c0_i32_1 = arith.constant 0 : i32
    return %c0_i32, %c0_i32_0 : i32, i32
  }
  func.func @transform_5(%arg0: i32) -> (i32, i32) {
    %c0_i32 = arith.constant 0 : i32
    %c0_i32_0 = arith.constant 0 : i32
    %c0_i32_1 = arith.constant 0 : i32
    return %c0_i32, %c0_i32_0 : i32, i32
  }
  func.func @transform_6(%arg0: i32) -> (i32, i32) {
    %c0_i32 = arith.constant 0 : i32
    %c0_i32_0 = arith.constant 0 : i32
    %c0_i32_1 = arith.constant 0 : i32
    return %c0_i32, %c0_i32_0 : i32, i32
  }
}

</mosaic_0001>

<llo_original>
// kernel: tpu_custom_call.1
$region0: #{tpu_custom_call.1}
  #allocation0 [shape = 'u32[]', space=smem, size = 0x4, offset = 0x4, fixed_abs, tag = 'smem constant byte address 0x4 - core index']
  #allocation1 [shape = 'u32[144,128]{1,0:T(1,128)}', space=vmem, size = 0x12000, scoped, tag = 'internal scratch']
  #allocation2 [shape = 'f32[80,32]{1,0:T(8,128)}', space=vmem, size = 0xa000, scoped, tag = 'scratch operand']
  %s0 = inlined_call_operand.vmem [shape: f32[80,24], index: 0, kind: input, shape index: {}]
  %s1 = inlined_call_operand.vmem [shape: f32[24,128], index: 1, kind: input, shape index: {}]
  %s2 = inlined_call_operand.vmem [shape: f32[32,128], index: 2, kind: input, shape index: {}]
  %s3 = inlined_call_operand.vmem [shape: f32[1,128], index: 3, kind: input, shape index: {}]
  %s4 = inlined_call_operand.vmem [shape: f32[32,32], index: 4, kind: input, shape index: {}]
  %s5 = inlined_call_operand.vmem [shape: f32[1,32], index: 5, kind: input, shape index: {}]
  %s6 = inlined_call_operand.vmem [shape: f32[80,32], index: 6, kind: output, shape index: {}]
  %s7 = sld [smem:[#allocation0]]
  $region34: #{tpu_custom_call.1} parent=0
    _
  %s9 = ssub.s32 1, %s7
  %s10 = scalar_select 0, %s9, %s7
  // Predicated region
  $region2: #{tpu_custom_call.1} parent=0 // pred_check
    _
  $region3: #{tpu_custom_call.1} parent=0 // pred_check_branch
    %12 = sbr.rel (0) target = $region5
  $region4: #{tpu_custom_call.1} parent=0 // pred_region
    _
  $region5: #{tpu_custom_call.1} parent=0 // pred_fallthru
    _
  // Predicated region
  $region6: #{tpu_custom_call.1} parent=0 // pred_check
    _
  $region7: #{tpu_custom_call.1} parent=0 // pred_check_branch
    %14 = sbr.rel (0) target = $region9
  $region8: #{tpu_custom_call.1} parent=0 // pred_region
    _
  $region9: #{tpu_custom_call.1} parent=0 // pred_fallthru
    _
  // Predicated region
  $region10: #{tpu_custom_call.1} parent=0 // pred_check
    _
  $region11: #{tpu_custom_call.1} parent=0 // pred_check_branch
    %16 = sbr.rel (0) target = $region13
  $region12: #{tpu_custom_call.1} parent=0 // pred_region
    _
  $region13: #{tpu_custom_call.1} parent=0 // pred_fallthru
    _
  // Predicated region
  $region14: #{tpu_custom_call.1} parent=0 // pred_check
    _
  $region15: #{tpu_custom_call.1} parent=0 // pred_check_branch
    %18 = sbr.rel (0) target = $region17
  $region16: #{tpu_custom_call.1} parent=0 // pred_region
    _
  $region17: #{tpu_custom_call.1} parent=0 // pred_fallthru
    _
  // Predicated region
  $region18: #{tpu_custom_call.1} parent=0 // pred_check
    _
  $region19: #{tpu_custom_call.1} parent=0 // pred_check_branch
    %20 = sbr.rel (0) target = $region21
  $region20: #{tpu_custom_call.1} parent=0 // pred_region
    _
  $region21: #{tpu_custom_call.1} parent=0 // pred_fallthru
    _
  // Predicated region
  $region22: #{tpu_custom_call.1} parent=0 // pred_check
    _
  $region23: #{tpu_custom_call.1} parent=0 // pred_check_branch
    %22 = sbr.rel (0) target = $region25
  $region24: #{tpu_custom_call.1} parent=0 // pred_region
    _
  $region25: #{tpu_custom_call.1} parent=0 // pred_fallthru
    _
  %v23 = vld [vmem:[%s0] sm:$0xff]
  %v24 = vld [vmem:[%s0 + $0x8] sm:$0xff]
  %v25 = vld [vmem:[%s0 + $0x10] sm:$0xff]
  %v26 = vld [vmem:[%s0 + $0x18] sm:$0xff]
  %v27 = vld [vmem:[%s0 + $0x20] sm:$0xff]
  %v28 = vld [vmem:[%s0 + $0x28] sm:$0xff]
  %v29 = vld [vmem:[%s0 + $0x30] sm:$0xff]
  %v30 = vld [vmem:[%s0 + $0x38] sm:$0xff]
  %v31 = vld [vmem:[%s0 + $0x40] sm:$0xff]
  %v32 = vld [vmem:[%s0 + $0x48] sm:$0xff]
  %v33 = vld [vmem:[%s1] sm:$0xff]
  %v34 = vld [vmem:[%s1 + $0x8] sm:$0xff]
  %v35 = vld [vmem:[%s1 + $0x10] sm:$0xff]
  %v36 = vld [vmem:[%s3] sm:$0x1]
  %v38 = vlaneseq
  %v39 = vshrl.u32 %v38, 7
  %v40 = vsub.s32 0, %v39
  %v41 = vrot.slane %v36, %v40
  %vm43 = vcmask 195584
  %v45 = vsel %vm43, %v23, 0
  %v48 = vsel %vm43, %v24, 0
  %v51 = vsel %vm43, %v25, 0
  %v54 = vsel %vm43, %v26, 0
  %v57 = vsel %vm43, %v27, 0
  %v60 = vsel %vm43, %v28, 0
  %v63 = vsel %vm43, %v29, 0
  %v66 = vsel %vm43, %v30, 0
  %v69 = vsel %vm43, %v31, 0
  %v72 = vsel %vm43, %v32, 0
  %74 = vmatprep.subr.mxu0 0.0
  %75 = vmatpush1.msra.mxu0 %v33
  %76 = vmatprep.subr.mxu0 0.0
  %77 = vmatpush1.msra.mxu0 %v34
  %78 = vmatprep.subr.mxu0 0.0
  %79 = vmatpush1.msra.mxu0 %v35
  %80 = vmatprep.subr.mxu0 0.0
  %81 = vmatpush1.msra.mxu0 0.0
  %82 = vmatprep.subr.mxu0 0.0
  %83 = vmatpush1.msra.mxu0 0.0
  %84 = vmatprep.subr.mxu0 0.0
  %85 = vmatpush1.msra.mxu0 0.0
  %86 = vmatprep.subr.mxu0 0.0
  %87 = vmatpush1.msra.mxu0 0.0
  %88 = vmatprep.subr.mxu0 0.0
  %89 = vmatpush1.msra.mxu0 0.0
  %90 = vmatprep.subr.mxu0 0.0
  %91 = vmatpush1.msra.mxu0 0.0
  %92 = vmatprep.subr.mxu0 0.0
  %93 = vmatpush1.msra.mxu0 0.0
  %94 = vmatprep.subr.mxu0 0.0
  %95 = vmatpush1.msra.mxu0 0.0
  %96 = vmatprep.subr.mxu0 0.0
  %97 = vmatpush1.msra.mxu0 0.0
  %98 = vmatprep.subr.mxu0 0.0
  %99 = vmatpush1.msra.mxu0 0.0
  %100 = vmatprep.subr.mxu0 0.0
  %101 = vmatpush1.msra.mxu0 0.0
  %102 = vmatprep.subr.mxu0 0.0
  %103 = vmatpush1.msra.mxu0 0.0
  %104 = vmatprep.subr.mxu0 0.0
  %105 = vmatpush1.msra.mxu0 0.0
  %106 = vmatprep.subr.mxu0 0.0
  %107 = vmatpush1.msra.mxu0 0.0
  %108 = vmatprep.subr.mxu0 0.0
  %109 = vmatpush1.msra.mxu0 0.0
  %110 = vmatprep.subr.mxu0 0.0
  %111 = vmatpush1.msra.mxu0 0.0
  %112 = vmatprep.subr.mxu0 0.0
  %113 = vmatpush1.msra.mxu0 0.0
  %114 = vmatprep.subr.mxu0 0.0
  %115 = vmatpush1.msra.mxu0 0.0
  %116 = vmatprep.subr.mxu0 0.0
  %117 = vmatpush1.msra.mxu0 0.0
  %118 = vmatprep.subr.mxu0 0.0
  %119 = vmatpush1.msra.mxu0 0.0
  %120 = vmatprep.subr.mxu0 0.0
  %121 = vmatpush1.msra.mxu0 0.0
  %122 = vmatprep.subr.mxu0 0.0
  %123 = vmatpush1.msra.mxu0 0.0
  %124 = vmatprep.subr.mxu0 0.0
  %125 = vmatpush1.msra.mxu0 0.0
  %126 = vmatprep.subr.mxu0 0.0
  %127 = vmatpush1.msra.mxu0 0.0
  %128 = vmatprep.subr.mxu0 0.0
  %129 = vmatpush1.msra.mxu0 0.0
  %130 = vmatprep.subr.mxu0 0.0
  %131 = vmatpush1.msra.mxu0 0.0
  %132 = vmatprep.subr.mxu0 0.0
  %133 = vmatpush1.msra.mxu0 0.0
  %134 = vmatprep.subr.mxu0 0.0
  %135 = vmatpush1.msra.mxu0 0.0
  %136 = vmatprep.subr.mxu0 0.0
  %137 = vmatpush1.msra.mxu0 0.0
  %138 = vmatprep.mubr.f32.mxu0 0.0
  %139 = vmatmul.mubr.f32.gmra.mrb[0].mxu0 %v45
  %v140 = vpop.f32.mrb[0].mxu0
  %v141 = vadd.f32 %v41, %v140
  %v142 = vpop.f32.mrb[0].mxu0
  %143 = vmatprep.mubr.f32.mxu0 0.0
  %144 = vmatmul.mubr.f32.gmra.mrb[0].mxu0 %v48
  %v145 = vpop.f32.mrb[0].mxu0
  %v146 = vadd.f32 %v41, %v145
  %v147 = vpop.f32.mrb[0].mxu0
  %148 = vmatprep.mubr.f32.mxu0 0.0
  %149 = vmatmul.mubr.f32.gmra.mrb[0].mxu0 %v51
  %v150 = vpop.f32.mrb[0].mxu0
  %v151 = vadd.f32 %v41, %v150
  %v152 = vpop.f32.mrb[0].mxu0
  %153 = vmatprep.mubr.f32.mxu0 0.0
  %154 = vmatmul.mubr.f32.gmra.mrb[0].mxu0 %v54
  %v155 = vpop.f32.mrb[0].mxu0
  %v156 = vadd.f32 %v41, %v155
  %v157 = vpop.f32.mrb[0].mxu0
  %158 = vmatprep.mubr.f32.mxu0 0.0
  %159 = vmatmul.mubr.f32.gmra.mrb[0].mxu0 %v57
  %v160 = vpop.f32.mrb[0].mxu0
  %v161 = vadd.f32 %v41, %v160
  %v162 = vpop.f32.mrb[0].mxu0
  %163 = vmatprep.mubr.f32.mxu0 0.0
  %164 = vmatmul.mubr.f32.gmra.mrb[0].mxu0 %v60
  %v165 = vpop.f32.mrb[0].mxu0
  %v166 = vadd.f32 %v41, %v165
  %v167 = vpop.f32.mrb[0].mxu0
  %168 = vmatprep.mubr.f32.mxu0 0.0
  %169 = vmatmul.mubr.f32.gmra.mrb[0].mxu0 %v63
  %v170 = vpop.f32.mrb[0].mxu0
  %v171 = vadd.f32 %v41, %v170
  %v172 = vpop.f32.mrb[0].mxu0
  %173 = vmatprep.mubr.f32.mxu0 0.0
  %174 = vmatmul.mubr.f32.gmra.mrb[0].mxu0 %v66
  %v175 = vpop.f32.mrb[0].mxu0
  %v176 = vadd.f32 %v41, %v175
  %v177 = vpop.f32.mrb[0].mxu0
  %178 = vmatprep.mubr.f32.mxu0 0.0
  %179 = vmatmul.mubr.f32.gmra.mrb[0].mxu0 %v69
  %v180 = vpop.f32.mrb[0].mxu0
  %v181 = vadd.f32 %v41, %v180
  %v182 = vpop.f32.mrb[0].mxu0
  %183 = vmatprep.mubr.f32.mxu0 0.0
  %184 = vmatmul.mubr.f32.gmra.mrb[0].mxu0 %v72
  %v185 = vpop.f32.mrb[0].mxu0
  %v186 = vadd.f32 %v41, %v185
  %v187 = vpop.f32.mrb[0].mxu0
  %188 = vdwg.mxu0
  %v189 = vld [vmem:[%s2] sm:$0xff]
  %v190 = vld [vmem:[%s2 + $0x8] sm:$0xff]
  %v191 = vld [vmem:[%s2 + $0x10] sm:$0xff]
  %v192 = vld [vmem:[%s2 + $0x18] sm:$0xff]
  %vm193 = vcmask 261120
  %v195 = vsel %vm193, 0.0, 0
  %197 = vmatprep.subr.mxu0 0.0
  %198 = vmatpush1.msra.mxu0 %v189
  %199 = vmatprep.subr.mxu0 0.0
  %200 = vmatpush1.msra.mxu0 %v190
  %201 = vmatprep.subr.mxu0 0.0
  %202 = vmatpush1.msra.mxu0 %v191
  %203 = vmatprep.subr.mxu0 0.0
  %204 = vmatpush1.msra.mxu0 %v192
  %205 = vmatprep.subr.mxu0 0.0
  %206 = vmatpush1.msra.mxu0 0.0
  %207 = vmatprep.subr.mxu0 0.0
  %208 = vmatpush1.msra.mxu0 0.0
  %209 = vmatprep.subr.mxu0 0.0
  %210 = vmatpush1.msra.mxu0 0.0
  %211 = vmatprep.subr.mxu0 0.0
  %212 = vmatpush1.msra.mxu0 0.0
  %213 = vmatprep.subr.mxu0 0.0
  %214 = vmatpush1.msra.mxu0 0.0
  %215 = vmatprep.subr.mxu0 0.0
  %216 = vmatpush1.msra.mxu0 0.0
  %217 = vmatprep.subr.mxu0 0.0
  %218 = vmatpush1.msra.mxu0 0.0
  %219 = vmatprep.subr.mxu0 0.0
  %220 = vmatpush1.msra.mxu0 0.0
  %221 = vmatprep.subr.mxu0 0.0
  %222 = vmatpush1.msra.mxu0 0.0
  %223 = vmatprep.subr.mxu0 0.0
  %224 = vmatpush1.msra.mxu0 0.0
  %225 = vmatprep.subr.mxu0 0.0
  %226 = vmatpush1.msra.mxu0 0.0
  %227 = vmatprep.subr.mxu0 0.0
  %228 = vmatpush1.msra.mxu0 0.0
  %229 = vmatprep.subr.mxu0 0.0
  %230 = vmatpush1.msra.mxu0 0.0
  %231 = vmatprep.subr.mxu0 0.0
  %232 = vmatpush1.msra.mxu0 0.0
  %233 = vmatprep.subr.mxu0 0.0
  %234 = vmatpush1.msra.mxu0 0.0
  %235 = vmatprep.subr.mxu0 0.0
  %236 = vmatpush1.msra.mxu0 0.0
  %237 = vmatprep.subr.mxu0 0.0
  %238 = vmatpush1.msra.mxu0 0.0
  %239 = vmatprep.subr.mxu0 0.0
  %240 = vmatpush1.msra.mxu0 0.0
  %241 = vmatprep.subr.mxu0 0.0
  %242 = vmatpush1.msra.mxu0 0.0
  %243 = vmatprep.subr.mxu0 0.0
  %244 = vmatpush1.msra.mxu0 0.0
  %245 = vmatprep.subr.mxu0 0.0
  %246 = vmatpush1.msra.mxu0 0.0
  %247 = vmatprep.subr.mxu0 0.0
  %248 = vmatpush1.msra.mxu0 0.0
  %249 = vmatprep.subr.mxu0 0.0
  %250 = vmatpush1.msra.mxu0 0.0
  %251 = vmatprep.subr.mxu0 0.0
  %252 = vmatpush1.msra.mxu0 0.0
  %253 = vmatprep.subr.mxu0 0.0
  %254 = vmatpush1.msra.mxu0 0.0
  %255 = vmatprep.subr.mxu0 0.0
  %256 = vmatpush1.msra.mxu0 0.0
  %257 = vmatprep.subr.mxu0 0.0
  %258 = vmatpush1.msra.mxu0 0.0
  %259 = vmatprep.subr.mxu0 0.0
  %260 = vmatpush1.msra.mxu0 0.0
  %261 = vmatprep.mubr.f32.mxu0 0.0
  %262 = vmatmul.mubr.f32.gmra.mrb[0].mxu0 %v195
  %v263 = vpop.f32.mrb[0].mxu0
  %v264 = vadd.f32 0.0, %v263
  %v265 = vpop.f32.mrb[0].mxu0
  %266 = vdwg.mxu0
  %v267 = vadd.f32 %v141, %v264
  %v268 = vxor.u32 %v267, 2147483648
  %v269 = vmul.f32 %v268, 1.442695
  %v270 = vpow.pop %v269
  %v271 = vadd.f32 %v270, 1.0
  %v272 = vrcp.pop %v271
  %v273 = vmul.f32 1.0, %v272
  %v274 = vtanh.pop %v267
  %v275 = vmul.f32 %v273, 0.0
  %277 = vrot.lane.b32.xlu0 %v274, 64
  %v278 = vpop.permute.xlu0 %277
  %v280 = vmul.f32 %v273, %v278
  %282 = vrot.lane.b32.xlu0 %v280, 32
  %v283 = vpop.permute.xlu0 %282
  %v285 = vadd.f32 %v275, %v283
  %v286 = vtanh.pop %v285
  %288 = vrot.lane.b32.xlu0 %v286, 64
  %v289 = vpop.permute.xlu0 %288
  %v291 = vmul.f32 %v273, %v289
  %293 = vrot.lane.b32.xlu0 %v291, 32
  %v294 = vpop.permute.xlu0 %293
  %296 = vst.msk [vmem:[#allocation2] sm:$0xff] %vm193, %v294
  %v297 = vsel %vm193, %v294, 0
  %299 = vmatprep.subr.mxu0 0.0
  %300 = vmatpush1.msra.mxu0 %v189
  %301 = vmatprep.subr.mxu0 0.0
  %302 = vmatpush1.msra.mxu0 %v190
  %303 = vmatprep.subr.mxu0 0.0
  %304 = vmatpush1.msra.mxu0 %v191
  %305 = vmatprep.subr.mxu0 0.0
  %306 = vmatpush1.msra.mxu0 %v192
  %307 = vmatprep.subr.mxu0 0.0
  %308 = vmatpush1.msra.mxu0 0.0
  %309 = vmatprep.subr.mxu0 0.0
  %310 = vmatpush1.msra.mxu0 0.0
  %311 = vmatprep.subr.mxu0 0.0
  %312 = vmatpush1.msra.mxu0 0.0
  %313 = vmatprep.subr.mxu0 0.0
  %314 = vmatpush1.msra.mxu0 0.0
  %315 = vmatprep.subr.mxu0 0.0
  %316 = vmatpush1.msra.mxu0 0.0
  %317 = vmatprep.subr.mxu0 0.0
  %318 = vmatpush1.msra.mxu0 0.0
  %319 = vmatprep.subr.mxu0 0.0
  %320 = vmatpush1.msra.mxu0 0.0
  %321 = vmatprep.subr.mxu0 0.0
  %322 = vmatpush1.msra.mxu0 0.0
  %323 = vmatprep.subr.mxu0 0.0
  %324 = vmatpush1.msra.mxu0 0.0
  %325 = vmatprep.subr.mxu0 0.0
  %326 = vmatpush1.msra.mxu0 0.0
  %327 = vmatprep.subr.mxu0 0.0
  %328 = vmatpush1.msra.mxu0 0.0
  %329 = vmatprep.subr.mxu0 0.0
  %330 = vmatpush1.msra.mxu0 0.0
  %331 = vmatprep.subr.mxu0 0.0
  %332 = vmatpush1.msra.mxu0 0.0
  %333 = vmatprep.subr.mxu0 0.0
  %334 = vmatpush1.msra.mxu0 0.0
  %335 = vmatprep.subr.mxu0 0.0
  %336 = vmatpush1.msra.mxu0 0.0
  %337 = vmatprep.subr.mxu0 0.0
  %338 = vmatpush1.msra.mxu0 0.0
  %339 = vmatprep.subr.mxu0 0.0
  %340 = vmatpush1.msra.mxu0 0.0
  %341 = vmatprep.subr.mxu0 0.0
  %342 = vmatpush1.msra.mxu0 0.0
  %343 = vmatprep.subr.mxu0 0.0
  %344 = vmatpush1.msra.mxu0 0.0
  %345 = vmatprep.subr.mxu0 0.0
  %346 = vmatpush1.msra.mxu0 0.0
  %347 = vmatprep.subr.mxu0 0.0
  %348 = vmatpush1.msra.mxu0 0.0
  %349 = vmatprep.subr.mxu0 0.0
  %350 = vmatpush1.msra.mxu0 0.0
  %351 = vmatprep.subr.mxu0 0.0
  %352 = vmatpush1.msra.mxu0 0.0
  %353 = vmatprep.subr.mxu0 0.0
  %354 = vmatpush1.msra.mxu0 0.0
  %355 = vmatprep.subr.mxu0 0.0
  %356 = vmatpush1.msra.mxu0 0.0
  %357 = vmatprep.subr.mxu0 0.0
  %358 = vmatpush1.msra.mxu0 0.0
  %359 = vmatprep.subr.mxu0 0.0
  %360 = vmatpush1.msra.mxu0 0.0
  %361 = vmatprep.subr.mxu0 0.0
  %362 = vmatpush1.msra.mxu0 0.0
  %363 = vmatprep.mubr.f32.mxu0 0.0
  %364 = vmatmul.mubr.f32.gmra.mrb[0].mxu0 %v297
  %v365 = vpop.f32.mrb[0].mxu0
  %v366 = vadd.f32 0.0, %v365
  %v367 = vpop.f32.mrb[0].mxu0
  %368 = vdwg.mxu0
  %v369 = vadd.f32 %v146, %v366
  %v370 = vxor.u32 %v369, 2147483648
  %v371 = vmul.f32 %v370, 1.442695
  %v372 = vpow.pop %v371
  %v373 = vadd.f32 %v372, 1.0
  %v374 = vrcp.pop %v373
  %v375 = vmul.f32 1.0, %v374
  %v376 = vtanh.pop %v369
  %v377 = vmul.f32 %v375, %v285
  %379 = vrot.lane.b32.xlu0 %v376, 64
  %v380 = vpop.permute.xlu0 %379
  %v382 = vmul.f32 %v375, %v380
  %384 = vrot.lane.b32.xlu0 %v382, 32
  %v385 = vpop.permute.xlu0 %384
  %v387 = vadd.f32 %v377, %v385
  %v388 = vtanh.pop %v387
  %390 = vrot.lane.b32.xlu0 %v388, 64
  %v391 = vpop.permute.xlu0 %390
  %v393 = vmul.f32 %v375, %v391
  %395 = vrot.lane.b32.xlu0 %v393, 32
  %v396 = vpop.permute.xlu0 %395
  %398 = vst.msk [vmem:[#allocation2 + $0x8] sm:$0xff] %vm193, %v396
  %v399 = vsel %vm193, %v396, 0
  %401 = vmatprep.subr.mxu0 0.0
  %402 = vmatpush1.msra.mxu0 %v189
  %403 = vmatprep.subr.mxu0 0.0
  %404 = vmatpush1.msra.mxu0 %v190
  %405 = vmatprep.subr.mxu0 0.0
  %406 = vmatpush1.msra.mxu0 %v191
  %407 = vmatprep.subr.mxu0 0.0
  %408 = vmatpush1.msra.mxu0 %v192
  %409 = vmatprep.subr.mxu0 0.0
  %410 = vmatpush1.msra.mxu0 0.0
  %411 = vmatprep.subr.mxu0 0.0
  %412 = vmatpush1.msra.mxu0 0.0
  %413 = vmatprep.subr.mxu0 0.0
  %414 = vmatpush1.msra.mxu0 0.0
  %415 = vmatprep.subr.mxu0 0.0
  %416 = vmatpush1.msra.mxu0 0.0
  %417 = vmatprep.subr.mxu0 0.0
  %418 = vmatpush1.msra.mxu0 0.0
  %419 = vmatprep.subr.mxu0 0.0
  %420 = vmatpush1.msra.mxu0 0.0
  %421 = vmatprep.subr.mxu0 0.0
  %422 = vmatpush1.msra.mxu0 0.0
  %423 = vmatprep.subr.mxu0 0.0
  %424 = vmatpush1.msra.mxu0 0.0
  %425 = vmatprep.subr.mxu0 0.0
  %426 = vmatpush1.msra.mxu0 0.0
  %427 = vmatprep.subr.mxu0 0.0
  %428 = vmatpush1.msra.mxu0 0.0
  %429 = vmatprep.subr.mxu0 0.0
  %430 = vmatpush1.msra.mxu0 0.0
  %431 = vmatprep.subr.mxu0 0.0
  %432 = vmatpush1.msra.mxu0 0.0
  %433 = vmatprep.subr.mxu0 0.0
  %434 = vmatpush1.msra.mxu0 0.0
  %435 = vmatprep.subr.mxu0 0.0
  %436 = vmatpush1.msra.mxu0 0.0
  %437 = vmatprep.subr.mxu0 0.0
  %438 = vmatpush1.msra.mxu0 0.0
  %439 = vmatprep.subr.mxu0 0.0
  %440 = vmatpush1.msra.mxu0 0.0
  %441 = vmatprep.subr.mxu0 0.0
  %442 = vmatpush1.msra.mxu0 0.0
  %443 = vmatprep.subr.mxu0 0.0
  %444 = vmatpush1.msra.mxu0 0.0
  %445 = vmatprep.subr.mxu0 0.0
  %446 = vmatpush1.msra.mxu0 0.0
  %447 = vmatprep.subr.mxu0 0.0
  %448 = vmatpush1.msra.mxu0 0.0
  %449 = vmatprep.subr.mxu0 0.0
  %450 = vmatpush1.msra.mxu0 0.0
  %451 = vmatprep.subr.mxu0 0.0
  %452 = vmatpush1.msra.mxu0 0.0
  %453 = vmatprep.subr.mxu0 0.0
  %454 = vmatpush1.msra.mxu0 0.0
  %455 = vmatprep.subr.mxu0 0.0
  %456 = vmatpush1.msra.mxu0 0.0
  %457 = vmatprep.subr.mxu0 0.0
  %458 = vmatpush1.msra.mxu0 0.0
  %459 = vmatprep.subr.mxu0 0.0
  %460 = vmatpush1.msra.mxu0 0.0
  %461 = vmatprep.subr.mxu0 0.0
  %462 = vmatpush1.msra.mxu0 0.0
  %463 = vmatprep.subr.mxu0 0.0
  %464 = vmatpush1.msra.mxu0 0.0
  %465 = vmatprep.mubr.f32.mxu0 0.0
  %466 = vmatmul.mubr.f32.gmra.mrb[0].mxu0 %v399
  %v467 = vpop.f32.mrb[0].mxu0
  %v468 = vadd.f32 0.0, %v467
  %v469 = vpop.f32.mrb[0].mxu0
  %470 = vdwg.mxu0
  %v471 = vadd.f32 %v151, %v468
  %v472 = vxor.u32 %v471, 2147483648
  %v473 = vmul.f32 %v472, 1.442695
  %v474 = vpow.pop %v473
  %v475 = vadd.f32 %v474, 1.0
  %v476 = vrcp.pop %v475
  %v477 = vmul.f32 1.0, %v476
  %v478 = vtanh.pop %v471
  %v479 = vmul.f32 %v477, %v387
  %481 = vrot.lane.b32.xlu0 %v478, 64
  %v482 = vpop.permute.xlu0 %481
  %v484 = vmul.f32 %v477, %v482
  %486 = vrot.lane.b32.xlu0 %v484, 32
  %v487 = vpop.permute.xlu0 %486
  %v489 = vadd.f32 %v479, %v487
  %v490 = vtanh.pop %v489
  %492 = vrot.lane.b32.xlu0 %v490, 64
  %v493 = vpop.permute.xlu0 %492
  %v495 = vmul.f32 %v477, %v493
  %497 = vrot.lane.b32.xlu0 %v495, 32
  %v498 = vpop.permute.xlu0 %497
  %500 = vst.msk [vmem:[#allocation2 + $0x10] sm:$0xff] %vm193, %v498
  %v501 = vsel %vm193, %v498, 0
  %503 = vmatprep.subr.mxu0 0.0
  %504 = vmatpush1.msra.mxu0 %v189
  %505 = vmatprep.subr.mxu0 0.0
  %506 = vmatpush1.msra.mxu0 %v190
  %507 = vmatprep.subr.mxu0 0.0
  %508 = vmatpush1.msra.mxu0 %v191
  %509 = vmatprep.subr.mxu0 0.0
  %510 = vmatpush1.msra.mxu0 %v192
  %511 = vmatprep.subr.mxu0 0.0
  %512 = vmatpush1.msra.mxu0 0.0
  %513 = vmatprep.subr.mxu0 0.0
  %514 = vmatpush1.msra.mxu0 0.0
  %515 = vmatprep.subr.mxu0 0.0
  %516 = vmatpush1.msra.mxu0 0.0
  %517 = vmatprep.subr.mxu0 0.0
  %518 = vmatpush1.msra.mxu0 0.0
  %519 = vmatprep.subr.mxu0 0.0
  %520 = vmatpush1.msra.mxu0 0.0
  %521 = vmatprep.subr.mxu0 0.0
  %522 = vmatpush1.msra.mxu0 0.0
  %523 = vmatprep.subr.mxu0 0.0
  %524 = vmatpush1.msra.mxu0 0.0
  %525 = vmatprep.subr.mxu0 0.0
  %526 = vmatpush1.msra.mxu0 0.0
  %527 = vmatprep.subr.mxu0 0.0
  %528 = vmatpush1.msra.mxu0 0.0
  %529 = vmatprep.subr.mxu0 0.0
  %530 = vmatpush1.msra.mxu0 0.0
  %531 = vmatprep.subr.mxu0 0.0
  %532 = vmatpush1.msra.mxu0 0.0
  %533 = vmatprep.subr.mxu0 0.0
  %534 = vmatpush1.msra.mxu0 0.0
  %535 = vmatprep.subr.mxu0 0.0
  %536 = vmatpush1.msra.mxu0 0.0
  %537 = vmatprep.subr.mxu0 0.0
  %538 = vmatpush1.msra.mxu0 0.0
  %539 = vmatprep.subr.mxu0 0.0
  %540 = vmatpush1.msra.mxu0 0.0
  %541 = vmatprep.subr.mxu0 0.0
  %542 = vmatpush1.msra.mxu0 0.0
  %543 = vmatprep.subr.mxu0 0.0
  %544 = vmatpush1.msra.mxu0 0.0
  %545 = vmatprep.subr.mxu0 0.0
  %546 = vmatpush1.msra.mxu0 0.0
  %547 = vmatprep.subr.mxu0 0.0
  %548 = vmatpush1.msra.mxu0 0.0
  %549 = vmatprep.subr.mxu0 0.0
  %550 = vmatpush1.msra.mxu0 0.0
  %551 = vmatprep.subr.mxu0 0.0
  %552 = vmatpush1.msra.mxu0 0.0
  %553 = vmatprep.subr.mxu0 0.0
  %554 = vmatpush1.msra.mxu0 0.0
  %555 = vmatprep.subr.mxu0 0.0
  %556 = vmatpush1.msra.mxu0 0.0
  %557 = vmatprep.subr.mxu0 0.0
  %558 = vmatpush1.msra.mxu0 0.0
  %559 = vmatprep.subr.mxu0 0.0
  %560 = vmatpush1.msra.mxu0 0.0
  %561 = vmatprep.subr.mxu0 0.0
  %562 = vmatpush1.msra.mxu0 0.0
  %563 = vmatprep.subr.mxu0 0.0
  %564 = vmatpush1.msra.mxu0 0.0
  %565 = vmatprep.subr.mxu0 0.0
  %566 = vmatpush1.msra.mxu0 0.0
  %567 = vmatprep.mubr.f32.mxu0 0.0
  %568 = vmatmul.mubr.f32.gmra.mrb[0].mxu0 %v501
  %v569 = vpop.f32.mrb[0].mxu0
  %v570 = vadd.f32 0.0, %v569
  %v571 = vpop.f32.mrb[0].mxu0
  %572 = vdwg.mxu0
  %v573 = vadd.f32 %v156, %v570
  %v574 = vxor.u32 %v573, 2147483648
  %v575 = vmul.f32 %v574, 1.442695
  %v576 = vpow.pop %v575
  %v577 = vadd.f32 %v576, 1.0
  %v578 = vrcp.pop %v577
  %v579 = vmul.f32 1.0, %v578
  %v580 = vtanh.pop %v573
  %v581 = vmul.f32 %v579, %v489
  %583 = vrot.lane.b32.xlu0 %v580, 64
  %v584 = vpop.permute.xlu0 %583
  %v586 = vmul.f32 %v579, %v584
  %588 = vrot.lane.b32.xlu0 %v586, 32
  %v589 = vpop.permute.xlu0 %588
  %v591 = vadd.f32 %v581, %v589
  %v592 = vtanh.pop %v591
  %594 = vrot.lane.b32.xlu0 %v592, 64
  %v595 = vpop.permute.xlu0 %594
  %v597 = vmul.f32 %v579, %v595
  %599 = vrot.lane.b32.xlu0 %v597, 32
  %v600 = vpop.permute.xlu0 %599
  %602 = vst.msk [vmem:[#allocation2 + $0x18] sm:$0xff] %vm193, %v600
  %v603 = vsel %vm193, %v600, 0
  %605 = vmatprep.subr.mxu0 0.0
  %606 = vmatpush1.msra.mxu0 %v189
  %607 = vmatprep.subr.mxu0 0.0
  %608 = vmatpush1.msra.mxu0 %v190
  %609 = vmatprep.subr.mxu0 0.0
  %610 = vmatpush1.msra.mxu0 %v191
  %611 = vmatprep.subr.mxu0 0.0
  %612 = vmatpush1.msra.mxu0 %v192
  %613 = vmatprep.subr.mxu0 0.0
  %614 = vmatpush1.msra.mxu0 0.0
  %615 = vmatprep.subr.mxu0 0.0
  %616 = vmatpush1.msra.mxu0 0.0
  %617 = vmatprep.subr.mxu0 0.0
  %618 = vmatpush1.msra.mxu0 0.0
  %619 = vmatprep.subr.mxu0 0.0
  %620 = vmatpush1.msra.mxu0 0.0
  %621 = vmatprep.subr.mxu0 0.0
  %622 = vmatpush1.msra.mxu0 0.0
  %623 = vmatprep.subr.mxu0 0.0
  %624 = vmatpush1.msra.mxu0 0.0
  %625 = vmatprep.subr.mxu0 0.0
  %626 = vmatpush1.msra.mxu0 0.0
  %627 = vmatprep.subr.mxu0 0.0
  %628 = vmatpush1.msra.mxu0 0.0
  %629 = vmatprep.subr.mxu0 0.0
  %630 = vmatpush1.msra.mxu0 0.0
  %631 = vmatprep.subr.mxu0 0.0
  %632 = vmatpush1.msra.mxu0 0.0
  %633 = vmatprep.subr.mxu0 0.0
  %634 = vmatpush1.msra.mxu0 0.0
  %635 = vmatprep.subr.mxu0 0.0
  %636 = vmatpush1.msra.mxu0 0.0
  %637 = vmatprep.subr.mxu0 0.0
  %638 = vmatpush1.msra.mxu0 0.0
  %639 = vmatprep.subr.mxu0 0.0
  %640 = vmatpush1.msra.mxu0 0.0
  %641 = vmatprep.subr.mxu0 0.0
  %642 = vmatpush1.msra.mxu0 0.0
  %643 = vmatprep.subr.mxu0 0.0
  %644 = vmatpush1.msra.mxu0 0.0
  %645 = vmatprep.subr.mxu0 0.0
  %646 = vmatpush1.msra.mxu0 0.0
  %647 = vmatprep.subr.mxu0 0.0
  %648 = vmatpush1.msra.mxu0 0.0
  %649 = vmatprep.subr.mxu0 0.0
  %650 = vmatpush1.msra.mxu0 0.0
  %651 = vmatprep.subr.mxu0 0.0
  %652 = vmatpush1.msra.mxu0 0.0
  %653 = vmatprep.subr.mxu0 0.0
  %654 = vmatpush1.msra.mxu0 0.0
  %655 = vmatprep.subr.mxu0 0.0
  %656 = vmatpush1.msra.mxu0 0.0
  %657 = vmatprep.subr.mxu0 0.0
  %658 = vmatpush1.msra.mxu0 0.0
  %659 = vmatprep.subr.mxu0 0.0
  %660 = vmatpush1.msra.mxu0 0.0
  %661 = vmatprep.subr.mxu0 0.0
  %662 = vmatpush1.msra.mxu0 0.0
  %663 = vmatprep.subr.mxu0 0.0
  %664 = vmatpush1.msra.mxu0 0.0
  %665 = vmatprep.subr.mxu0 0.0
  %666 = vmatpush1.msra.mxu0 0.0
  %667 = vmatprep.subr.mxu0 0.0
  %668 = vmatpush1.msra.mxu0 0.0
  %669 = vmatprep.mubr.f32.mxu0 0.0
  %670 = vmatmul.mubr.f32.gmra.mrb[0].mxu0 %v603
  %v671 = vpop.f32.mrb[0].mxu0
  %v672 = vadd.f32 0.0, %v671
  %v673 = vpop.f32.mrb[0].mxu0
  %674 = vdwg.mxu0
  %v675 = vadd.f32 %v161, %v672
  %v676 = vxor.u32 %v675, 2147483648
  %v677 = vmul.f32 %v676, 1.442695
  %v678 = vpow.pop %v677
  %v679 = vadd.f32 %v678, 1.0
  %v680 = vrcp.pop %v679
  %v681 = vmul.f32 1.0, %v680
  %v682 = vtanh.pop %v675
  %v683 = vmul.f32 %v681, %v591
  %685 = vrot.lane.b32.xlu0 %v682, 64
  %v686 = vpop.permute.xlu0 %685
  %v688 = vmul.f32 %v681, %v686
  %690 = vrot.lane.b32.xlu0 %v688, 32
  %v691 = vpop.permute.xlu0 %690
  %v693 = vadd.f32 %v683, %v691
  %v694 = vtanh.pop %v693
  %696 = vrot.lane.b32.xlu0 %v694, 64
  %v697 = vpop.permute.xlu0 %696
  %v699 = vmul.f32 %v681, %v697
  %701 = vrot.lane.b32.xlu0 %v699, 32
  %v702 = vpop.permute.xlu0 %701
  %704 = vst.msk [vmem:[#allocation2 + $0x20] sm:$0xff] %vm193, %v702
  %v705 = vsel %vm193, %v702, 0
  %707 = vmatprep.subr.mxu0 0.0
  %708 = vmatpush1.msra.mxu0 %v189
  %709 = vmatprep.subr.mxu0 0.0
  %710 = vmatpush1.msra.mxu0 %v190
  %711 = vmatprep.subr.mxu0 0.0
  %712 = vmatpush1.msra.mxu0 %v191
  %713 = vmatprep.subr.mxu0 0.0
  %714 = vmatpush1.msra.mxu0 %v192
  %715 = vmatprep.subr.mxu0 0.0
  %716 = vmatpush1.msra.mxu0 0.0
  %717 = vmatprep.subr.mxu0 0.0
  %718 = vmatpush1.msra.mxu0 0.0
  %719 = vmatprep.subr.mxu0 0.0
  %720 = vmatpush1.msra.mxu0 0.0
  %721 = vmatprep.subr.mxu0 0.0
  %722 = vmatpush1.msra.mxu0 0.0
  %723 = vmatprep.subr.mxu0 0.0
  %724 = vmatpush1.msra.mxu0 0.0
  %725 = vmatprep.subr.mxu0 0.0
  %726 = vmatpush1.msra.mxu0 0.0
  %727 = vmatprep.subr.mxu0 0.0
  %728 = vmatpush1.msra.mxu0 0.0
  %729 = vmatprep.subr.mxu0 0.0
  %730 = vmatpush1.msra.mxu0 0.0
  %731 = vmatprep.subr.mxu0 0.0
  %732 = vmatpush1.msra.mxu0 0.0
  %733 = vmatprep.subr.mxu0 0.0
  %734 = vmatpush1.msra.mxu0 0.0
  %735 = vmatprep.subr.mxu0 0.0
  %736 = vmatpush1.msra.mxu0 0.0
  %737 = vmatprep.subr.mxu0 0.0
  %738 = vmatpush1.msra.mxu0 0.0
  %739 = vmatprep.subr.mxu0 0.0
  %740 = vmatpush1.msra.mxu0 0.0
  %741 = vmatprep.subr.mxu0 0.0
  %742 = vmatpush1.msra.mxu0 0.0
  %743 = vmatprep.subr.mxu0 0.0
  %744 = vmatpush1.msra.mxu0 0.0
  %745 = vmatprep.subr.mxu0 0.0
  %746 = vmatpush1.msra.mxu0 0.0
  %747 = vmatprep.subr.mxu0 0.0
  %748 = vmatpush1.msra.mxu0 0.0
  %749 = vmatprep.subr.mxu0 0.0
  %750 = vmatpush1.msra.mxu0 0.0
  %751 = vmatprep.subr.mxu0 0.0
  %752 = vmatpush1.msra.mxu0 0.0
  %753 = vmatprep.subr.mxu0 0.0
  %754 = vmatpush1.msra.mxu0 0.0
  %755 = vmatprep.subr.mxu0 0.0
  %756 = vmatpush1.msra.mxu0 0.0
  %757 = vmatprep.subr.mxu0 0.0
  %758 = vmatpush1.msra.mxu0 0.0
  %759 = vmatprep.subr.mxu0 0.0
  %760 = vmatpush1.msra.mxu0 0.0
  %761 = vmatprep.subr.mxu0 0.0
  %762 = vmatpush1.msra.mxu0 0.0
  %763 = vmatprep.subr.mxu0 0.0
  %764 = vmatpush1.msra.mxu0 0.0
  %765 = vmatprep.subr.mxu0 0.0
  %766 = vmatpush1.msra.mxu0 0.0
  %767 = vmatprep.subr.mxu0 0.0
  %768 = vmatpush1.msra.mxu0 0.0
  %769 = vmatprep.subr.mxu0 0.0
  %770 = vmatpush1.msra.mxu0 0.0
  %771 = vmatprep.mubr.f32.mxu0 0.0
  %772 = vmatmul.mubr.f32.gmra.mrb[0].mxu0 %v705
  %v773 = vpop.f32.mrb[0].mxu0
  %v774 = vadd.f32 0.0, %v773
  %v775 = vpop.f32.mrb[0].mxu0
  %776 = vdwg.mxu0
  %v777 = vadd.f32 %v166, %v774
  %v778 = vxor.u32 %v777, 2147483648
  %v779 = vmul.f32 %v778, 1.442695
  %v780 = vpow.pop %v779
  %v781 = vadd.f32 %v780, 1.0
  %v782 = vrcp.pop %v781
  %v783 = vmul.f32 1.0, %v782
  %v784 = vtanh.pop %v777
  %v785 = vmul.f32 %v783, %v693
  %787 = vrot.lane.b32.xlu0 %v784, 64
  %v788 = vpop.permute.xlu0 %787
  %v790 = vmul.f32 %v783, %v788
  %792 = vrot.lane.b32.xlu0 %v790, 32
  %v793 = vpop.permute.xlu0 %792
  %v795 = vadd.f32 %v785, %v793
  %v796 = vtanh.pop %v795
  %798 = vrot.lane.b32.xlu0 %v796, 64
  %v799 = vpop.permute.xlu0 %798
  %v801 = vmul.f32 %v783, %v799
  %803 = vrot.lane.b32.xlu0 %v801, 32
  %v804 = vpop.permute.xlu0 %803
  %806 = vst.msk [vmem:[#allocation2 + $0x28] sm:$0xff] %vm193, %v804
  %v807 = vsel %vm193, %v804, 0
  %809 = vmatprep.subr.mxu0 0.0
  %810 = vmatpush1.msra.mxu0 %v189
  %811 = vmatprep.subr.mxu0 0.0
  %812 = vmatpush1.msra.mxu0 %v190
  %813 = vmatprep.subr.mxu0 0.0
  %814 = vmatpush1.msra.mxu0 %v191
  %815 = vmatprep.subr.mxu0 0.0
  %816 = vmatpush1.msra.mxu0 %v192
  %817 = vmatprep.subr.mxu0 0.0
  %818 = vmatpush1.msra.mxu0 0.0
  %819 = vmatprep.subr.mxu0 0.0
  %820 = vmatpush1.msra.mxu0 0.0
  %821 = vmatprep.subr.mxu0 0.0
  %822 = vmatpush1.msra.mxu0 0.0
  %823 = vmatprep.subr.mxu0 0.0
  %824 = vmatpush1.msra.mxu0 0.0
  %825 = vmatprep.subr.mxu0 0.0
  %826 = vmatpush1.msra.mxu0 0.0
  %827 = vmatprep.subr.mxu0 0.0
  %828 = vmatpush1.msra.mxu0 0.0
  %829 = vmatprep.subr.mxu0 0.0
  %830 = vmatpush1.msra.mxu0 0.0
  %831 = vmatprep.subr.mxu0 0.0
  %832 = vmatpush1.msra.mxu0 0.0
  %833 = vmatprep.subr.mxu0 0.0
  %834 = vmatpush1.msra.mxu0 0.0
  %835 = vmatprep.subr.mxu0 0.0
  %836 = vmatpush1.msra.mxu0 0.0
  %837 = vmatprep.subr.mxu0 0.0
  %838 = vmatpush1.msra.mxu0 0.0
  %839 = vmatprep.subr.mxu0 0.0
  %840 = vmatpush1.msra.mxu0 0.0
  %841 = vmatprep.subr.mxu0 0.0
  %842 = vmatpush1.msra.mxu0 0.0
  %843 = vmatprep.subr.mxu0 0.0
  %844 = vmatpush1.msra.mxu0 0.0
  %845 = vmatprep.subr.mxu0 0.0
  %846 = vmatpush1.msra.mxu0 0.0
  %847 = vmatprep.subr.mxu0 0.0
  %848 = vmatpush1.msra.mxu0 0.0
  %849 = vmatprep.subr.mxu0 0.0
  %850 = vmatpush1.msra.mxu0 0.0
  %851 = vmatprep.subr.mxu0 0.0
  %852 = vmatpush1.msra.mxu0 0.0
  %853 = vmatprep.subr.mxu0 0.0
  %854 = vmatpush1.msra.mxu0 0.0
  %855 = vmatprep.subr.mxu0 0.0
  %856 = vmatpush1.msra.mxu0 0.0
  %857 = vmatprep.subr.mxu0 0.0
  %858 = vmatpush1.msra.mxu0 0.0
  %859 = vmatprep.subr.mxu0 0.0
  %860 = vmatpush1.msra.mxu0 0.0
  %861 = vmatprep.subr.mxu0 0.0
  %862 = vmatpush1.msra.mxu0 0.0
  %863 = vmatprep.subr.mxu0 0.0
  %864 = vmatpush1.msra.mxu0 0.0
  %865 = vmatprep.subr.mxu0 0.0
  %866 = vmatpush1.msra.mxu0 0.0
  %867 = vmatprep.subr.mxu0 0.0
  %868 = vmatpush1.msra.mxu0 0.0
  %869 = vmatprep.subr.mxu0 0.0
  %870 = vmatpush1.msra.mxu0 0.0
  %871 = vmatprep.subr.mxu0 0.0
  %872 = vmatpush1.msra.mxu0 0.0
  %873 = vmatprep.mubr.f32.mxu0 0.0
  %874 = vmatmul.mubr.f32.gmra.mrb[0].mxu0 %v807
  %v875 = vpop.f32.mrb[0].mxu0
  %v876 = vadd.f32 0.0, %v875
  %v877 = vpop.f32.mrb[0].mxu0
  %878 = vdwg.mxu0
  %v879 = vadd.f32 %v171, %v876
  %v880 = vxor.u32 %v879, 2147483648
  %v881 = vmul.f32 %v880, 1.442695
  %v882 = vpow.pop %v881
  %v883 = vadd.f32 %v882, 1.0
  %v884 = vrcp.pop %v883
  %v885 = vmul.f32 1.0, %v884
  %v886 = vtanh.pop %v879
  %v887 = vmul.f32 %v885, %v795
  %889 = vrot.lane.b32.xlu0 %v886, 64
  %v890 = vpop.permute.xlu0 %889
  %v892 = vmul.f32 %v885, %v890
  %894 = vrot.lane.b32.xlu0 %v892, 32
  %v895 = vpop.permute.xlu0 %894
  %v897 = vadd.f32 %v887, %v895
  %v898 = vtanh.pop %v897
  %900 = vrot.lane.b32.xlu0 %v898, 64
  %v901 = vpop.permute.xlu0 %900
  %v903 = vmul.f32 %v885, %v901
  %905 = vrot.lane.b32.xlu0 %v903, 32
  %v906 = vpop.permute.xlu0 %905
  %908 = vst.msk [vmem:[#allocation2 + $0x30] sm:$0xff] %vm193, %v906
  %v909 = vsel %vm193, %v906, 0
  %911 = vmatprep.subr.mxu0 0.0
  %912 = vmatpush1.msra.mxu0 %v189
  %913 = vmatprep.subr.mxu0 0.0
  %914 = vmatpush1.msra.mxu0 %v190
  %915 = vmatprep.subr.mxu0 0.0
  %916 = vmatpush1.msra.mxu0 %v191
  %917 = vmatprep.subr.mxu0 0.0
  %918 = vmatpush1.msra.mxu0 %v192
  %919 = vmatprep.subr.mxu0 0.0
  %920 = vmatpush1.msra.mxu0 0.0
  %921 = vmatprep.subr.mxu0 0.0
  %922 = vmatpush1.msra.mxu0 0.0
  %923 = vmatprep.subr.mxu0 0.0
  %924 = vmatpush1.msra.mxu0 0.0
  %925 = vmatprep.subr.mxu0 0.0
  %926 = vmatpush1.msra.mxu0 0.0
  %927 = vmatprep.subr.mxu0 0.0
  %928 = vmatpush1.msra.mxu0 0.0
  %929 = vmatprep.subr.mxu0 0.0
  %930 = vmatpush1.msra.mxu0 0.0
  %931 = vmatprep.subr.mxu0 0.0
  %932 = vmatpush1.msra.mxu0 0.0
  %933 = vmatprep.subr.mxu0 0.0
  %934 = vmatpush1.msra.mxu0 0.0
  %935 = vmatprep.subr.mxu0 0.0
  %936 = vmatpush1.msra.mxu0 0.0
  %937 = vmatprep.subr.mxu0 0.0
  %938 = vmatpush1.msra.mxu0 0.0
  %939 = vmatprep.subr.mxu0 0.0
  %940 = vmatpush1.msra.mxu0 0.0
  %941 = vmatprep.subr.mxu0 0.0
  %942 = vmatpush1.msra.mxu0 0.0
  %943 = vmatprep.subr.mxu0 0.0
  %944 = vmatpush1.msra.mxu0 0.0
  %945 = vmatprep.subr.mxu0 0.0
  %946 = vmatpush1.msra.mxu0 0.0
  %947 = vmatprep.subr.mxu0 0.0
  %948 = vmatpush1.msra.mxu0 0.0
  %949 = vmatprep.subr.mxu0 0.0
  %950 = vmatpush1.msra.mxu0 0.0
  %951 = vmatprep.subr.mxu0 0.0
  %952 = vmatpush1.msra.mxu0 0.0
  %953 = vmatprep.subr.mxu0 0.0
  %954 = vmatpush1.msra.mxu0 0.0
  %955 = vmatprep.subr.mxu0 0.0
  %956 = vmatpush1.msra.mxu0 0.0
  %957 = vmatprep.subr.mxu0 0.0
  %958 = vmatpush1.msra.mxu0 0.0
  %959 = vmatprep.subr.mxu0 0.0
  %960 = vmatpush1.msra.mxu0 0.0
  %961 = vmatprep.subr.mxu0 0.0
  %962 = vmatpush1.msra.mxu0 0.0
  %963 = vmatprep.subr.mxu0 0.0
  %964 = vmatpush1.msra.mxu0 0.0
  %965 = vmatprep.subr.mxu0 0.0
  %966 = vmatpush1.msra.mxu0 0.0
  %967 = vmatprep.subr.mxu0 0.0
  %968 = vmatpush1.msra.mxu0 0.0
  %969 = vmatprep.subr.mxu0 0.0
  %970 = vmatpush1.msra.mxu0 0.0
  %971 = vmatprep.subr.mxu0 0.0
  %972 = vmatpush1.msra.mxu0 0.0
  %973 = vmatprep.subr.mxu0 0.0
  %974 = vmatpush1.msra.mxu0 0.0
  %975 = vmatprep.mubr.f32.mxu0 0.0
  %976 = vmatmul.mubr.f32.gmra.mrb[0].mxu0 %v909
  %v977 = vpop.f32.mrb[0].mxu0
  %v978 = vadd.f32 0.0, %v977
  %v979 = vpop.f32.mrb[0].mxu0
  %980 = vdwg.mxu0
  %v981 = vadd.f32 %v176, %v978
  %v982 = vxor.u32 %v981, 2147483648
  %v983 = vmul.f32 %v982, 1.442695
  %v984 = vpow.pop %v983
  %v985 = vadd.f32 %v984, 1.0
  %v986 = vrcp.pop %v985
  %v987 = vmul.f32 1.0, %v986
  %v988 = vtanh.pop %v981
  %v989 = vmul.f32 %v987, %v897
  %991 = vrot.lane.b32.xlu0 %v988, 64
  %v992 = vpop.permute.xlu0 %991
  %v994 = vmul.f32 %v987, %v992
  %996 = vrot.lane.b32.xlu0 %v994, 32
  %v997 = vpop.permute.xlu0 %996
  %v999 = vadd.f32 %v989, %v997
  %v1000 = vtanh.pop %v999
  %1002 = vrot.lane.b32.xlu0 %v1000, 64
  %v1003 = vpop.permute.xlu0 %1002
  %v1005 = vmul.f32 %v987, %v1003
  %1007 = vrot.lane.b32.xlu0 %v1005, 32
  %v1008 = vpop.permute.xlu0 %1007
  %1010 = vst.msk [vmem:[#allocation2 + $0x38] sm:$0xff] %vm193, %v1008
  %v1011 = vsel %vm193, %v1008, 0
  %1013 = vmatprep.subr.mxu0 0.0
  %1014 = vmatpush1.msra.mxu0 %v189
  %1015 = vmatprep.subr.mxu0 0.0
  %1016 = vmatpush1.msra.mxu0 %v190
  %1017 = vmatprep.subr.mxu0 0.0
  %1018 = vmatpush1.msra.mxu0 %v191
  %1019 = vmatprep.subr.mxu0 0.0
  %1020 = vmatpush1.msra.mxu0 %v192
  %1021 = vmatprep.subr.mxu0 0.0
  %1022 = vmatpush1.msra.mxu0 0.0
  %1023 = vmatprep.subr.mxu0 0.0
  %1024 = vmatpush1.msra.mxu0 0.0
  %1025 = vmatprep.subr.mxu0 0.0
  %1026 = vmatpush1.msra.mxu0 0.0
  %1027 = vmatprep.subr.mxu0 0.0
  %1028 = vmatpush1.msra.mxu0 0.0
  %1029 = vmatprep.subr.mxu0 0.0
  %1030 = vmatpush1.msra.mxu0 0.0
  %1031 = vmatprep.subr.mxu0 0.0
  %1032 = vmatpush1.msra.mxu0 0.0
  %1033 = vmatprep.subr.mxu0 0.0
  %1034 = vmatpush1.msra.mxu0 0.0
  %1035 = vmatprep.subr.mxu0 0.0
  %1036 = vmatpush1.msra.mxu0 0.0
  %1037 = vmatprep.subr.mxu0 0.0
  %1038 = vmatpush1.msra.mxu0 0.0
  %1039 = vmatprep.subr.mxu0 0.0
  %1040 = vmatpush1.msra.mxu0 0.0
  %1041 = vmatprep.subr.mxu0 0.0
  %1042 = vmatpush1.msra.mxu0 0.0
  %1043 = vmatprep.subr.mxu0 0.0
  %1044 = vmatpush1.msra.mxu0 0.0
  %1045 = vmatprep.subr.mxu0 0.0
  %1046 = vmatpush1.msra.mxu0 0.0
  %1047 = vmatprep.subr.mxu0 0.0
  %1048 = vmatpush1.msra.mxu0 0.0
  %1049 = vmatprep.subr.mxu0 0.0
  %1050 = vmatpush1.msra.mxu0 0.0
  %1051 = vmatprep.subr.mxu0 0.0
  %1052 = vmatpush1.msra.mxu0 0.0
  %1053 = vmatprep.subr.mxu0 0.0
  %1054 = vmatpush1.msra.mxu0 0.0
  %1055 = vmatprep.subr.mxu0 0.0
  %1056 = vmatpush1.msra.mxu0 0.0
  %1057 = vmatprep.subr.mxu0 0.0
  %1058 = vmatpush1.msra.mxu0 0.0
  %1059 = vmatprep.subr.mxu0 0.0
  %1060 = vmatpush1.msra.mxu0 0.0
  %1061 = vmatprep.subr.mxu0 0.0
  %1062 = vmatpush1.msra.mxu0 0.0
  %1063 = vmatprep.subr.mxu0 0.0
  %1064 = vmatpush1.msra.mxu0 0.0
  %1065 = vmatprep.subr.mxu0 0.0
  %1066 = vmatpush1.msra.mxu0 0.0
  %1067 = vmatprep.subr.mxu0 0.0
  %1068 = vmatpush1.msra.mxu0 0.0
  %1069 = vmatprep.subr.mxu0 0.0
  %1070 = vmatpush1.msra.mxu0 0.0
  %1071 = vmatprep.subr.mxu0 0.0
  %1072 = vmatpush1.msra.mxu0 0.0
  %1073 = vmatprep.subr.mxu0 0.0
  %1074 = vmatpush1.msra.mxu0 0.0
  %1075 = vmatprep.subr.mxu0 0.0
  %1076 = vmatpush1.msra.mxu0 0.0
  %1077 = vmatprep.mubr.f32.mxu0 0.0
  %1078 = vmatmul.mubr.f32.gmra.mrb[0].mxu0 %v1011
  %v1079 = vpop.f32.mrb[0].mxu0
  %v1080 = vadd.f32 0.0, %v1079
  %v1081 = vpop.f32.mrb[0].mxu0
  %1082 = vdwg.mxu0
  %v1083 = vadd.f32 %v181, %v1080
  %v1084 = vxor.u32 %v1083, 2147483648
  %v1085 = vmul.f32 %v1084, 1.442695
  %v1086 = vpow.pop %v1085
  %v1087 = vadd.f32 %v1086, 1.0
  %v1088 = vrcp.pop %v1087
  %v1089 = vmul.f32 1.0, %v1088
  %v1090 = vtanh.pop %v1083
  %v1091 = vmul.f32 %v1089, %v999
  %1093 = vrot.lane.b32.xlu0 %v1090, 64
  %v1094 = vpop.permute.xlu0 %1093
  %v1096 = vmul.f32 %v1089, %v1094
  %1098 = vrot.lane.b32.xlu0 %v1096, 32
  %v1099 = vpop.permute.xlu0 %1098
  %v1101 = vadd.f32 %v1091, %v1099
  %v1102 = vtanh.pop %v1101
  %1104 = vrot.lane.b32.xlu0 %v1102, 64
  %v1105 = vpop.permute.xlu0 %1104
  %v1107 = vmul.f32 %v1089, %v1105
  %1109 = vrot.lane.b32.xlu0 %v1107, 32
  %v1110 = vpop.permute.xlu0 %1109
  %1112 = vst.msk [vmem:[#allocation2 + $0x40] sm:$0xff] %vm193, %v1110
  %v1113 = vsel %vm193, %v1110, 0
  %1115 = vmatprep.subr.mxu0 0.0
  %1116 = vmatpush1.msra.mxu0 %v189
  %1117 = vmatprep.subr.mxu0 0.0
  %1118 = vmatpush1.msra.mxu0 %v190
  %1119 = vmatprep.subr.mxu0 0.0
  %1120 = vmatpush1.msra.mxu0 %v191
  %1121 = vmatprep.subr.mxu0 0.0
  %1122 = vmatpush1.msra.mxu0 %v192
  %1123 = vmatprep.subr.mxu0 0.0
  %1124 = vmatpush1.msra.mxu0 0.0
  %1125 = vmatprep.subr.mxu0 0.0
  %1126 = vmatpush1.msra.mxu0 0.0
  %1127 = vmatprep.subr.mxu0 0.0
  %1128 = vmatpush1.msra.mxu0 0.0
  %1129 = vmatprep.subr.mxu0 0.0
  %1130 = vmatpush1.msra.mxu0 0.0
  %1131 = vmatprep.subr.mxu0 0.0
  %1132 = vmatpush1.msra.mxu0 0.0
  %1133 = vmatprep.subr.mxu0 0.0
  %1134 = vmatpush1.msra.mxu0 0.0
  %1135 = vmatprep.subr.mxu0 0.0
  %1136 = vmatpush1.msra.mxu0 0.0
  %1137 = vmatprep.subr.mxu0 0.0
  %1138 = vmatpush1.msra.mxu0 0.0
  %1139 = vmatprep.subr.mxu0 0.0
  %1140 = vmatpush1.msra.mxu0 0.0
  %1141 = vmatprep.subr.mxu0 0.0
  %1142 = vmatpush1.msra.mxu0 0.0
  %1143 = vmatprep.subr.mxu0 0.0
  %1144 = vmatpush1.msra.mxu0 0.0
  %1145 = vmatprep.subr.mxu0 0.0
  %1146 = vmatpush1.msra.mxu0 0.0
  %1147 = vmatprep.subr.mxu0 0.0
  %1148 = vmatpush1.msra.mxu0 0.0
  %1149 = vmatprep.subr.mxu0 0.0
  %1150 = vmatpush1.msra.mxu0 0.0
  %1151 = vmatprep.subr.mxu0 0.0
  %1152 = vmatpush1.msra.mxu0 0.0
  %1153 = vmatprep.subr.mxu0 0.0
  %1154 = vmatpush1.msra.mxu0 0.0
  %1155 = vmatprep.subr.mxu0 0.0
  %1156 = vmatpush1.msra.mxu0 0.0
  %1157 = vmatprep.subr.mxu0 0.0
  %1158 = vmatpush1.msra.mxu0 0.0
  %1159 = vmatprep.subr.mxu0 0.0
  %1160 = vmatpush1.msra.mxu0 0.0
  %1161 = vmatprep.subr.mxu0 0.0
  %1162 = vmatpush1.msra.mxu0 0.0
  %1163 = vmatprep.subr.mxu0 0.0
  %1164 = vmatpush1.msra.mxu0 0.0
  %1165 = vmatprep.subr.mxu0 0.0
  %1166 = vmatpush1.msra.mxu0 0.0
  %1167 = vmatprep.subr.mxu0 0.0
  %1168 = vmatpush1.msra.mxu0 0.0
  %1169 = vmatprep.subr.mxu0 0.0
  %1170 = vmatpush1.msra.mxu0 0.0
  %1171 = vmatprep.subr.mxu0 0.0
  %1172 = vmatpush1.msra.mxu0 0.0
  %1173 = vmatprep.subr.mxu0 0.0
  %1174 = vmatpush1.msra.mxu0 0.0
  %1175 = vmatprep.subr.mxu0 0.0
  %1176 = vmatpush1.msra.mxu0 0.0
  %1177 = vmatprep.subr.mxu0 0.0
  %1178 = vmatpush1.msra.mxu0 0.0
  %1179 = vmatprep.mubr.f32.mxu0 0.0
  %1180 = vmatmul.mubr.f32.gmra.mrb[0].mxu0 %v1113
  %v1181 = vpop.f32.mrb[0].mxu0
  %v1182 = vadd.f32 0.0, %v1181
  %v1183 = vpop.f32.mrb[0].mxu0
  %1184 = vdwg.mxu0
  %v1185 = vadd.f32 %v186, %v1182
  %v1186 = vxor.u32 %v1185, 2147483648
  %v1187 = vmul.f32 %v1186, 1.442695
  %v1188 = vpow.pop %v1187
  %v1189 = vadd.f32 %v1188, 1.0
  %v1190 = vrcp.pop %v1189
  %v1191 = vmul.f32 1.0, %v1190
  %v1192 = vtanh.pop %v1185
  %v1193 = vmul.f32 %v1191, %v1101
  %1195 = vrot.lane.b32.xlu0 %v1192, 64
  %v1196 = vpop.permute.xlu0 %1195
  %v1198 = vmul.f32 %v1191, %v1196
  %1200 = vrot.lane.b32.xlu0 %v1198, 32
  %v1201 = vpop.permute.xlu0 %1200
  %v1203 = vadd.f32 %v1193, %v1201
  %v1204 = vtanh.pop %v1203
  %1206 = vrot.lane.b32.xlu0 %v1204, 64
  %v1207 = vpop.permute.xlu0 %1206
  %v1209 = vmul.f32 %v1191, %v1207
  %1211 = vrot.lane.b32.xlu0 %v1209, 32
  %v1212 = vpop.permute.xlu0 %1211
  %1214 = vst.msk [vmem:[#allocation2 + $0x48] sm:$0xff] %vm193, %v1212
  %v1215 = vld [vmem:[#allocation2] sm:$0xff]
  %v1216 = vld [vmem:[#allocation2 + $0x8] sm:$0xff]
  %v1217 = vld [vmem:[#allocation2 + $0x10] sm:$0xff]
  %v1218 = vld [vmem:[#allocation2 + $0x18] sm:$0xff]
  %v1219 = vld [vmem:[#allocation2 + $0x20] sm:$0xff]
  %v1220 = vld [vmem:[#allocation2 + $0x28] sm:$0xff]
  %v1221 = vld [vmem:[#allocation2 + $0x30] sm:$0xff]
  %v1222 = vld [vmem:[#allocation2 + $0x38] sm:$0xff]
  %v1223 = vld [vmem:[#allocation2 + $0x40] sm:$0xff]
  %v1224 = vld [vmem:[#allocation2 + $0x48] sm:$0xff]
  %v1225 = vld [vmem:[%s4] sm:$0xff]
  %v1226 = vld [vmem:[%s4 + $0x8] sm:$0xff]
  %v1227 = vld [vmem:[%s4 + $0x10] sm:$0xff]
  %v1228 = vld [vmem:[%s4 + $0x18] sm:$0xff]
  %v1229 = vld [vmem:[%s5] sm:$0x1]
  %v1231 = vlaneseq
  %v1232 = vshrl.u32 %v1231, 7
  %v1233 = vsub.s32 0, %v1232
  %v1234 = vrot.slane %v1229, %v1233
  %v1237 = vsel %vm193, %v1215, 0
  %v1240 = vsel %vm193, %v1216, 0
  %v1243 = vsel %vm193, %v1217, 0
  %v1246 = vsel %vm193, %v1218, 0
  %v1249 = vsel %vm193, %v1219, 0
  %v1252 = vsel %vm193, %v1220, 0
  %v1255 = vsel %vm193, %v1221, 0
  %v1258 = vsel %vm193, %v1222, 0
  %v1261 = vsel %vm193, %v1223, 0
  %v1264 = vsel %vm193, %v1224, 0
  %1266 = vmatprep.subr.mxu0 0.0
  %1267 = vmatpush1.msra.mxu0 %v1225
  %1268 = vmatprep.subr.mxu0 0.0
  %1269 = vmatpush1.msra.mxu0 %v1226
  %1270 = vmatprep.subr.mxu0 0.0
  %1271 = vmatpush1.msra.mxu0 %v1227
  %1272 = vmatprep.subr.mxu0 0.0
  %1273 = vmatpush1.msra.mxu0 %v1228
  %1274 = vmatprep.subr.mxu0 0.0
  %1275 = vmatpush1.msra.mxu0 0.0
  %1276 = vmatprep.subr.mxu0 0.0
  %1277 = vmatpush1.msra.mxu0 0.0
  %1278 = vmatprep.subr.mxu0 0.0
  %1279 = vmatpush1.msra.mxu0 0.0
  %1280 = vmatprep.subr.mxu0 0.0
  %1281 = vmatpush1.msra.mxu0 0.0
  %1282 = vmatprep.subr.mxu0 0.0
  %1283 = vmatpush1.msra.mxu0 0.0
  %1284 = vmatprep.subr.mxu0 0.0
  %1285 = vmatpush1.msra.mxu0 0.0
  %1286 = vmatprep.subr.mxu0 0.0
  %1287 = vmatpush1.msra.mxu0 0.0
  %1288 = vmatprep.subr.mxu0 0.0
  %1289 = vmatpush1.msra.mxu0 0.0
  %1290 = vmatprep.subr.mxu0 0.0
  %1291 = vmatpush1.msra.mxu0 0.0
  %1292 = vmatprep.subr.mxu0 0.0
  %1293 = vmatpush1.msra.mxu0 0.0
  %1294 = vmatprep.subr.mxu0 0.0
  %1295 = vmatpush1.msra.mxu0 0.0
  %1296 = vmatprep.subr.mxu0 0.0
  %1297 = vmatpush1.msra.mxu0 0.0
  %1298 = vmatprep.subr.mxu0 0.0
  %1299 = vmatpush1.msra.mxu0 0.0
  %1300 = vmatprep.subr.mxu0 0.0
  %1301 = vmatpush1.msra.mxu0 0.0
  %1302 = vmatprep.subr.mxu0 0.0
  %1303 = vmatpush1.msra.mxu0 0.0
  %1304 = vmatprep.subr.mxu0 0.0
  %1305 = vmatpush1.msra.mxu0 0.0
  %1306 = vmatprep.subr.mxu0 0.0
  %1307 = vmatpush1.msra.mxu0 0.0
  %1308 = vmatprep.subr.mxu0 0.0
  %1309 = vmatpush1.msra.mxu0 0.0
  %1310 = vmatprep.subr.mxu0 0.0
  %1311 = vmatpush1.msra.mxu0 0.0
  %1312 = vmatprep.subr.mxu0 0.0
  %1313 = vmatpush1.msra.mxu0 0.0
  %1314 = vmatprep.subr.mxu0 0.0
  %1315 = vmatpush1.msra.mxu0 0.0
  %1316 = vmatprep.subr.mxu0 0.0
  %1317 = vmatpush1.msra.mxu0 0.0
  %1318 = vmatprep.subr.mxu0 0.0
  %1319 = vmatpush1.msra.mxu0 0.0
  %1320 = vmatprep.subr.mxu0 0.0
  %1321 = vmatpush1.msra.mxu0 0.0
  %1322 = vmatprep.subr.mxu0 0.0
  %1323 = vmatpush1.msra.mxu0 0.0
  %1324 = vmatprep.subr.mxu0 0.0
  %1325 = vmatpush1.msra.mxu0 0.0
  %1326 = vmatprep.subr.mxu0 0.0
  %1327 = vmatpush1.msra.mxu0 0.0
  %1328 = vmatprep.subr.mxu0 0.0
  %1329 = vmatpush1.msra.mxu0 0.0
  %1330 = vmatprep.mubr.f32.mxu0 0.0
  %1331 = vmatmul.mubr.f32.gmra.mrb[0].mxu0 %v1237
  %v1332 = vpop.f32.mrb[0].mxu0
  %v1333 = vadd.f32 %v1234, %v1332
  %v1334 = vpop.f32.mrb[0].mxu0
  %1335 = vmatprep.mubr.f32.mxu0 0.0
  %1336 = vmatmul.mubr.f32.gmra.mrb[0].mxu0 %v1240
  %v1337 = vpop.f32.mrb[0].mxu0
  %v1338 = vadd.f32 %v1234, %v1337
  %v1339 = vpop.f32.mrb[0].mxu0
  %1340 = vmatprep.mubr.f32.mxu0 0.0
  %1341 = vmatmul.mubr.f32.gmra.mrb[0].mxu0 %v1243
  %v1342 = vpop.f32.mrb[0].mxu0
  %v1343 = vadd.f32 %v1234, %v1342
  %v1344 = vpop.f32.mrb[0].mxu0
  %1345 = vmatprep.mubr.f32.mxu0 0.0
  %1346 = vmatmul.mubr.f32.gmra.mrb[0].mxu0 %v1246
  %v1347 = vpop.f32.mrb[0].mxu0
  %v1348 = vadd.f32 %v1234, %v1347
  %v1349 = vpop.f32.mrb[0].mxu0
  %1350 = vmatprep.mubr.f32.mxu0 0.0
  %1351 = vmatmul.mubr.f32.gmra.mrb[0].mxu0 %v1249
  %v1352 = vpop.f32.mrb[0].mxu0
  %v1353 = vadd.f32 %v1234, %v1352
  %v1354 = vpop.f32.mrb[0].mxu0
  %1355 = vmatprep.mubr.f32.mxu0 0.0
  %1356 = vmatmul.mubr.f32.gmra.mrb[0].mxu0 %v1252
  %v1357 = vpop.f32.mrb[0].mxu0
  %v1358 = vadd.f32 %v1234, %v1357
  %v1359 = vpop.f32.mrb[0].mxu0
  %1360 = vmatprep.mubr.f32.mxu0 0.0
  %1361 = vmatmul.mubr.f32.gmra.mrb[0].mxu0 %v1255
  %v1362 = vpop.f32.mrb[0].mxu0
  %v1363 = vadd.f32 %v1234, %v1362
  %v1364 = vpop.f32.mrb[0].mxu0
  %1365 = vmatprep.mubr.f32.mxu0 0.0
  %1366 = vmatmul.mubr.f32.gmra.mrb[0].mxu0 %v1258
  %v1367 = vpop.f32.mrb[0].mxu0
  %v1368 = vadd.f32 %v1234, %v1367
  %v1369 = vpop.f32.mrb[0].mxu0
  %1370 = vmatprep.mubr.f32.mxu0 0.0
  %1371 = vmatmul.mubr.f32.gmra.mrb[0].mxu0 %v1261
  %v1372 = vpop.f32.mrb[0].mxu0
  %v1373 = vadd.f32 %v1234, %v1372
  %v1374 = vpop.f32.mrb[0].mxu0
  %1375 = vmatprep.mubr.f32.mxu0 0.0
  %1376 = vmatmul.mubr.f32.gmra.mrb[0].mxu0 %v1264
  %v1377 = vpop.f32.mrb[0].mxu0
  %v1378 = vadd.f32 %v1234, %v1377
  %v1379 = vpop.f32.mrb[0].mxu0
  %1380 = vdwg.mxu0
  %1381 = vst.msk [vmem:[%s6] sm:$0xff] %vm193, %v1333
  %1382 = vst.msk [vmem:[%s6 + $0x8] sm:$0xff] %vm193, %v1338
  %1383 = vst.msk [vmem:[%s6 + $0x10] sm:$0xff] %vm193, %v1343
  %1384 = vst.msk [vmem:[%s6 + $0x18] sm:$0xff] %vm193, %v1348
  %1385 = vst.msk [vmem:[%s6 + $0x20] sm:$0xff] %vm193, %v1353
  %1386 = vst.msk [vmem:[%s6 + $0x28] sm:$0xff] %vm193, %v1358
  %1387 = vst.msk [vmem:[%s6 + $0x30] sm:$0xff] %vm193, %v1363
  %1388 = vst.msk [vmem:[%s6 + $0x38] sm:$0xff] %vm193, %v1368
  %1389 = vst.msk [vmem:[%s6 + $0x40] sm:$0xff] %vm193, %v1373
  %1390 = vst.msk [vmem:[%s6 + $0x48] sm:$0xff] %vm193, %v1378
  // Predicated region
  $region26: #{tpu_custom_call.1} parent=0 // pred_check
    _
  $region27: #{tpu_custom_call.1} parent=0 // pred_check_branch
    %1392 = sbr.rel (0) target = $region29
  $region28: #{tpu_custom_call.1} parent=0 // pred_region
    _
  $region29: #{tpu_custom_call.1} parent=0 // pred_fallthru
    _
  // Predicated region
  $region30: #{tpu_custom_call.1} parent=0 // pred_check
    _
  $region31: #{tpu_custom_call.1} parent=0 // pred_check_branch
    %1394 = sbr.rel (0) target = $region33
  $region32: #{tpu_custom_call.1} parent=0 // pred_region
    _
  $region33: #{tpu_custom_call.1} parent=0 // pred_fallthru
    _

</llo_original>
